<compile_context>
chip_gen: v5e
topology: v5e:2x2
jax: 0.10.0
libtpu: 0.0.40
codegen_flags: <defaults>
</compile_context>

<pallas_src>
import jax
import jax.numpy as jnp
from jax import lax
from jax.experimental import pallas as pl
from jax.experimental.pallas import tpu as pltpu


# -----------------------------------------------------------------------------
# Pallas kernel: in-kernel embedding/input-projection gather + GRU recurrence
# (one packed hidden matmul per step) + Linear + sigmoid.
# -----------------------------------------------------------------------------
def gru_fc_kernel(ids_ref,      # (B, T) int32, SMEM
                  gi_tbl_ref,   # (V+1, 3H) f32, VMEM   (b_ih + b_hr/b_hz folded)
                  w_hh_ref,     # (H, 3H)   f32, VMEM   packed gate cols [r|z|n]
                  b_hn_ref,     # (1, H)
                  w_fc_ref,     # (H, O)
                  b_fc_ref,     # (1, O)
                  out_ref,      # (B, O)
                  gi_scr_ref):  # (T, B, 3H) VMEM scratch
    B, T = ids_ref.shape
    H = w_hh_ref.shape[0]

    # ---- Gather phase (off the serial critical path) -----------------------
    # Per-(t, b) scalar-indexed row loads from the fused gi table into VMEM
    # scratch.  Static Python loops: T*B = 16 tiny (1, 3H) copies.
    for t in range(T):
        for b in range(B):
            idx = ids_ref[b, t]
            gi_scr_ref[t, pl.ds(b, 1), :] = gi_tbl_ref[pl.ds(idx, 1), :]

    w_hh = w_hh_ref[...]          # (H, 3H)
    b_hn = b_hn_ref[...]          # (1, H)

    def step(t, h):
        gi = gi_scr_ref[t]        # (B, 3H): x@W_ih^T + b_ih (+ b_hr/b_hz in r/z)
        # ONE MXU pass per step: (B, H) @ (H, 3H).
        gh = jnp.dot(h, w_hh, preferred_element_type=jnp.float32)   # (B, 3H)
        r = jax.nn.sigmoid(gi[:, 0:H] + gh[:, 0:H])
        z = jax.nn.sigmoid(gi[:, H:2 * H] + gh[:, H:2 * H])
        # PyTorch GRU: n = tanh(i_n + r * (h @ W_hn^T + b_hn))  — b_hn NOT folded.
        n = jnp.tanh(gi[:, 2 * H:3 * H] + r * (gh[:, 2 * H:3 * H] + b_hn))
        return (1.0 - z) * n + z * h                                  # (B, H)

    h0 = jnp.zeros((B, H), dtype=jnp.float32)
    # T is small and static; full unroll gives the scheduler cross-step
    # visibility.  (If T grows past ~32-64, switch to unroll=2..4.)
    h_last = lax.fori_loop(0, T, step, h0, unroll=True)   # == output[:, -1, :]

    logits = jnp.dot(h_last, w_fc_ref[...],
                     preferred_element_type=jnp.float32) + b_fc_ref[...]
    out_ref[...] = jax.nn.sigmoid(logits)


# -----------------------------------------------------------------------------
# Wrapper: single pallas_call, no wrapper-side gathers / transposes.
# -----------------------------------------------------------------------------
@jax.jit
def quantum_nlp_forward(x_tokens, params):
    gi_tbl = params["gi_tbl"]            # (V+1, 3H)
    w_hh_t = params["w_hh_t"]            # (H, 3H)
    b_hn = params["b_hn"]                # (1, H)
    w_fc_t = params["w_fc_t"]            # (H, O)
    b_fc = params["b_fc"]                # (1, O)

    B, T = x_tokens.shape
    H = w_hh_t.shape[0]
    O = w_fc_t.shape[1]

    smem = pl.BlockSpec(memory_space=pltpu.MemorySpace.SMEM)
    vmem = pl.BlockSpec(memory_space=pltpu.MemorySpace.VMEM)

    flops = 2 * T * B * H * 3 * H + 2 * B * H * O
    transcendentals = T * B * 3 * H
    bytes_accessed = (4 * (gi_tbl.size + w_hh_t.size + b_hn.size
                           + w_fc_t.size + b_fc.size + B * O)
                      + 4 * B * T)

    return pl.pallas_call(
        gru_fc_kernel,
        out_shape=jax.ShapeDtypeStruct((B, O), jnp.float32),
        in_specs=[smem, vmem, vmem, vmem, vmem, vmem],
        out_specs=vmem,
        scratch_shapes=[pltpu.VMEM((T, B, 3 * H), jnp.float32)],
        cost_estimate=pl.CostEstimate(flops=flops,
                                      transcendentals=transcendentals,
                                      bytes_accessed=bytes_accessed),
    )(x_tokens.astype(jnp.int32), gi_tbl, w_hh_t, b_hn, w_fc_t, b_fc)


# -----------------------------------------------------------------------------
# Pure-JAX reference (PyTorch GRU semantics) for a correctness check.
# -----------------------------------------------------------------------------
def reference_forward(x_tokens, p):
    emb, w_ih, w_hh = p["embedding"], p["w_ih"], p["w_hh"]
    b_ih, b_hh = p["b_ih_vec"], p["b_hh_vec"]
    w_fc, b_fc = p["w_fc"], p["b_fc_vec"]
    H = w_hh.shape[1]

    x = jnp.take(emb, x_tokens, axis=0)            # (B, T, E)
    B = x.shape[0]

    def step(h, x_t):
        gi = x_t @ w_ih.T + b_ih
        gh = h @ w_hh.T + b_hh
        i_r, i_z, i_n = gi[:, :H], gi[:, H:2 * H], gi[:, 2 * H:]
        h_r, h_z, h_n = gh[:, :H], gh[:, H:2 * H], gh[:, 2 * H:]
        r = jax.nn.sigmoid(i_r + h_r)
        z = jax.nn.sigmoid(i_z + h_z)
        n = jnp.tanh(i_n + r * h_n)
        return (1.0 - z) * n + z * h, None

    h0 = jnp.zeros((B, H), jnp.float32)
    h_last, _ = lax.scan(step, h0, jnp.swapaxes(x, 0, 1))
    return jax.nn.sigmoid(h_last @ w_fc.T + b_fc)


# -----------------------------------------------------------------------------
# Deterministic parameter construction (mirrors nn.Embedding / nn.GRU /
# nn.Linear shapes) plus the packed/fused layout the kernel consumes.
# -----------------------------------------------------------------------------
def make_params(key, vocab_size, embedding_dim, hidden_dim, output_dim):
    ks = jax.random.split(key, 7)
    scale = 0.1
    V, E, H, O = vocab_size, embedding_dim, hidden_dim, output_dim

    emb = scale * jax.random.normal(ks[0], (V + 1, E), jnp.float32)
    emb = emb.at[0].set(0.0)  # padding_idx=0

    # PyTorch GRU params: weight_ih_l0 (3H, E), weight_hh_l0 (3H, H), biases (3H,)
    # Gate order along the 3H axis: [r | z | n].
    w_ih = scale * jax.random.normal(ks[1], (3 * H, E), jnp.float32)
    w_hh = scale * jax.random.normal(ks[2], (3 * H, H), jnp.float32)
    b_ih = scale * jax.random.normal(ks[3], (3 * H,), jnp.float32)
    b_hh = scale * jax.random.normal(ks[4], (3 * H,), jnp.float32)

    # fc: Linear(hidden_dim, output_dim) -> weight (O, H), bias (O,)
    w_fc = scale * jax.random.normal(ks[5], (O, H), jnp.float32)
    b_fc = scale * jax.random.normal(ks[6], (O,), jnp.float32)

    # ---- kernel-friendly packing -------------------------------------------
    # Fuse embedding lookup with the input projection:
    #   gi_table[v] = emb[v] @ W_ih^T + b_ih        (V+1, 3H)
    gi_table = emb @ w_ih.T + b_ih[None, :]
    # Fold the hidden biases for the r and z gates (they always add outside any
    # nonlinearity/product).  b_hn must stay separate: n = tanh(i_n + r*(Wh+b_hn)).
    gi_table = gi_table.at[:, 0:H].add(b_hh[0:H])
    gi_table = gi_table.at[:, H:2 * H].add(b_hh[H:2 * H])

    return {
        # kernel inputs (packed)
        "gi_tbl": gi_table,                           # (V+1, 3H)
        "w_hh_t": jnp.transpose(w_hh),                # (H, 3H), cols [r|z|n]
        "b_hn": b_hh[2 * H:3 * H].reshape(1, H),      # (1, H)
        "w_fc_t": jnp.transpose(w_fc),                # (H, O)
        "b_fc": b_fc.reshape(1, O),                   # (1, O)
        # PyTorch-shaped originals (for the reference check only)
        "embedding": emb,
        "w_ih": w_ih,
        "w_hh": w_hh,
        "b_ih_vec": b_ih,
        "b_hh_vec": b_hh,
        "w_fc": w_fc,
        "b_fc_vec": b_fc,
    }


if __name__ == "__main__":
    # Small shapes consistent with the module: E=16, H=32, O=2.
    vocab_size = 50
    embedding_dim = 16
    hidden_dim = 32
    output_dim = 2
    batch = 2
    seq_len = 8

    key = jax.random.PRNGKey(0)
    pkey, xkey = jax.random.split(key)
    params = make_params(pkey, vocab_size, embedding_dim, hidden_dim, output_dim)

    # Token ids in [0, vocab_size]; 0 is padding.
    x = jax.random.randint(xkey, (batch, seq_len), 0, vocab_size + 1,
                           dtype=jnp.int32)

    out = quantum_nlp_forward(x, params)
    out = jax.block_until_ready(out)

    assert out.shape == (batch, output_dim)
    assert out.dtype == jnp.float32
    assert bool(jnp.all(jnp.isfinite(out)))
    assert bool(jnp.all((out >= 0.0) & (out <= 1.0)))

    ref = jax.block_until_ready(reference_forward(x, params))
    assert bool(jnp.allclose(out, ref, atol=1e-4, rtol=1e-4)), (
        f"mismatch vs reference: max abs diff {jnp.max(jnp.abs(out - ref))}")

    print("KERNEL_OK")
</pallas_src>

<mosaic_0001>
module attributes {stable_mosaic.version = 11 : i64} {
  func.func @gru_fc_kernel(%arg0: memref<2x8xi32, #tpu.memory_space<smem>>, %arg1: memref<51x96xf32, #tpu.memory_space<vmem>>, %arg2: memref<32x96xf32, #tpu.memory_space<vmem>>, %arg3: memref<1x32xf32, #tpu.memory_space<vmem>>, %arg4: memref<32x2xf32, #tpu.memory_space<vmem>>, %arg5: memref<1x2xf32, #tpu.memory_space<vmem>>, %arg6: memref<2x2xf32, #tpu.memory_space<vmem>>, %arg7: memref<8x2x96xf32, #tpu.memory_space<vmem>>) attributes {dimension_semantics = [], scalar_prefetch = 0 : i64, scratch_operands = 1 : i64, tpu.core_type = #tpu.core_type<tc>} {
    %c0 = arith.constant 0 : index
    %c0_0 = arith.constant 0 : index
    %0 = memref.load %arg0[%c0, %c0_0] : memref<2x8xi32, #tpu.memory_space<smem>>
    %1 = arith.index_cast %0 : i32 to index
    %c0_1 = arith.constant 0 : index
    %2 = vector.load %arg1[%1, %c0_1] : memref<51x96xf32, #tpu.memory_space<vmem>>, vector<1x96xf32>
    %c0_2 = arith.constant 0 : index
    %c0_3 = arith.constant 0 : index
    %c0_4 = arith.constant 0 : index
    %3 = vector.load %arg7[%c0_2, %c0_3, %c0_4] : memref<8x2x96xf32, #tpu.memory_space<vmem>>, vector<1x1x96xf32>
    %4 = vector.shape_cast %3 : vector<1x1x96xf32> to vector<1x96xf32>
    %5 = vector.shape_cast %2 : vector<1x96xf32> to vector<1x1x96xf32>
    tpu.vector_store %arg7[%c0_2, %c0_3, %c0_4], %5 {strides = array<i32>} : memref<8x2x96xf32, #tpu.memory_space<vmem>>, vector<1x1x96xf32>,
    %c1 = arith.constant 1 : index
    %c0_5 = arith.constant 0 : index
    %6 = memref.load %arg0[%c1, %c0_5] : memref<2x8xi32, #tpu.memory_space<smem>>
    %7 = arith.index_cast %6 : i32 to index
    %c0_6 = arith.constant 0 : index
    %8 = vector.load %arg1[%7, %c0_6] : memref<51x96xf32, #tpu.memory_space<vmem>>, vector<1x96xf32>
    %c0_7 = arith.constant 0 : index
    %c1_8 = arith.constant 1 : index
    %c0_9 = arith.constant 0 : index
    %9 = vector.load %arg7[%c0_7, %c1_8, %c0_9] : memref<8x2x96xf32, #tpu.memory_space<vmem>>, vector<1x1x96xf32>
    %10 = vector.shape_cast %9 : vector<1x1x96xf32> to vector<1x96xf32>
    %11 = vector.shape_cast %8 : vector<1x96xf32> to vector<1x1x96xf32>
    tpu.vector_store %arg7[%c0_7, %c1_8, %c0_9], %11 {strides = array<i32>} : memref<8x2x96xf32, #tpu.memory_space<vmem>>, vector<1x1x96xf32>,
    %c0_10 = arith.constant 0 : index
    %c1_11 = arith.constant 1 : index
    %12 = memref.load %arg0[%c0_10, %c1_11] : memref<2x8xi32, #tpu.memory_space<smem>>
    %13 = arith.index_cast %12 : i32 to index
    %c0_12 = arith.constant 0 : index
    %14 = vector.load %arg1[%13, %c0_12] : memref<51x96xf32, #tpu.memory_space<vmem>>, vector<1x96xf32>
    %c1_13 = arith.constant 1 : index
    %c0_14 = arith.constant 0 : index
    %c0_15 = arith.constant 0 : index
    %15 = vector.load %arg7[%c1_13, %c0_14, %c0_15] : memref<8x2x96xf32, #tpu.memory_space<vmem>>, vector<1x1x96xf32>
    %16 = vector.shape_cast %15 : vector<1x1x96xf32> to vector<1x96xf32>
    %17 = vector.shape_cast %14 : vector<1x96xf32> to vector<1x1x96xf32>
    tpu.vector_store %arg7[%c1_13, %c0_14, %c0_15], %17 {strides = array<i32>} : memref<8x2x96xf32, #tpu.memory_space<vmem>>, vector<1x1x96xf32>,
    %c1_16 = arith.constant 1 : index
    %c1_17 = arith.constant 1 : index
    %18 = memref.load %arg0[%c1_16, %c1_17] : memref<2x8xi32, #tpu.memory_space<smem>>
    %19 = arith.index_cast %18 : i32 to index
    %c0_18 = arith.constant 0 : index
    %20 = vector.load %arg1[%19, %c0_18] : memref<51x96xf32, #tpu.memory_space<vmem>>, vector<1x96xf32>
    %c1_19 = arith.constant 1 : index
    %c1_20 = arith.constant 1 : index
    %c0_21 = arith.constant 0 : index
    %21 = vector.load %arg7[%c1_19, %c1_20, %c0_21] : memref<8x2x96xf32, #tpu.memory_space<vmem>>, vector<1x1x96xf32>
    %22 = vector.shape_cast %21 : vector<1x1x96xf32> to vector<1x96xf32>
    %23 = vector.shape_cast %20 : vector<1x96xf32> to vector<1x1x96xf32>
    tpu.vector_store %arg7[%c1_19, %c1_20, %c0_21], %23 {strides = array<i32>} : memref<8x2x96xf32, #tpu.memory_space<vmem>>, vector<1x1x96xf32>,
    %c0_22 = arith.constant 0 : index
    %c2 = arith.constant 2 : index
    %24 = memref.load %arg0[%c0_22, %c2] : memref<2x8xi32, #tpu.memory_space<smem>>
    %25 = arith.index_cast %24 : i32 to index
    %c0_23 = arith.constant 0 : index
    %26 = vector.load %arg1[%25, %c0_23] : memref<51x96xf32, #tpu.memory_space<vmem>>, vector<1x96xf32>
    %c2_24 = arith.constant 2 : index
    %c0_25 = arith.constant 0 : index
    %c0_26 = arith.constant 0 : index
    %27 = vector.load %arg7[%c2_24, %c0_25, %c0_26] : memref<8x2x96xf32, #tpu.memory_space<vmem>>, vector<1x1x96xf32>
    %28 = vector.shape_cast %27 : vector<1x1x96xf32> to vector<1x96xf32>
    %29 = vector.shape_cast %26 : vector<1x96xf32> to vector<1x1x96xf32>
    tpu.vector_store %arg7[%c2_24, %c0_25, %c0_26], %29 {strides = array<i32>} : memref<8x2x96xf32, #tpu.memory_space<vmem>>, vector<1x1x96xf32>,
    %c1_27 = arith.constant 1 : index
    %c2_28 = arith.constant 2 : index
    %30 = memref.load %arg0[%c1_27, %c2_28] : memref<2x8xi32, #tpu.memory_space<smem>>
    %31 = arith.index_cast %30 : i32 to index
    %c0_29 = arith.constant 0 : index
    %32 = vector.load %arg1[%31, %c0_29] : memref<51x96xf32, #tpu.memory_space<vmem>>, vector<1x96xf32>
    %c2_30 = arith.constant 2 : index
    %c1_31 = arith.constant 1 : index
    %c0_32 = arith.constant 0 : index
    %33 = vector.load %arg7[%c2_30, %c1_31, %c0_32] : memref<8x2x96xf32, #tpu.memory_space<vmem>>, vector<1x1x96xf32>
    %34 = vector.shape_cast %33 : vector<1x1x96xf32> to vector<1x96xf32>
    %35 = vector.shape_cast %32 : vector<1x96xf32> to vector<1x1x96xf32>
    tpu.vector_store %arg7[%c2_30, %c1_31, %c0_32], %35 {strides = array<i32>} : memref<8x2x96xf32, #tpu.memory_space<vmem>>, vector<1x1x96xf32>,
    %c0_33 = arith.constant 0 : index
    %c3 = arith.constant 3 : index
    %36 = memref.load %arg0[%c0_33, %c3] : memref<2x8xi32, #tpu.memory_space<smem>>
    %37 = arith.index_cast %36 : i32 to index
    %c0_34 = arith.constant 0 : index
    %38 = vector.load %arg1[%37, %c0_34] : memref<51x96xf32, #tpu.memory_space<vmem>>, vector<1x96xf32>
    %c3_35 = arith.constant 3 : index
    %c0_36 = arith.constant 0 : index
    %c0_37 = arith.constant 0 : index
    %39 = vector.load %arg7[%c3_35, %c0_36, %c0_37] : memref<8x2x96xf32, #tpu.memory_space<vmem>>, vector<1x1x96xf32>
    %40 = vector.shape_cast %39 : vector<1x1x96xf32> to vector<1x96xf32>
    %41 = vector.shape_cast %38 : vector<1x96xf32> to vector<1x1x96xf32>
    tpu.vector_store %arg7[%c3_35, %c0_36, %c0_37], %41 {strides = array<i32>} : memref<8x2x96xf32, #tpu.memory_space<vmem>>, vector<1x1x96xf32>,
    %c1_38 = arith.constant 1 : index
    %c3_39 = arith.constant 3 : index
    %42 = memref.load %arg0[%c1_38, %c3_39] : memref<2x8xi32, #tpu.memory_space<smem>>
    %43 = arith.index_cast %42 : i32 to index
    %c0_40 = arith.constant 0 : index
    %44 = vector.load %arg1[%43, %c0_40] : memref<51x96xf32, #tpu.memory_space<vmem>>, vector<1x96xf32>
    %c3_41 = arith.constant 3 : index
    %c1_42 = arith.constant 1 : index
    %c0_43 = arith.constant 0 : index
    %45 = vector.load %arg7[%c3_41, %c1_42, %c0_43] : memref<8x2x96xf32, #tpu.memory_space<vmem>>, vector<1x1x96xf32>
    %46 = vector.shape_cast %45 : vector<1x1x96xf32> to vector<1x96xf32>
    %47 = vector.shape_cast %44 : vector<1x96xf32> to vector<1x1x96xf32>
    tpu.vector_store %arg7[%c3_41, %c1_42, %c0_43], %47 {strides = array<i32>} : memref<8x2x96xf32, #tpu.memory_space<vmem>>, vector<1x1x96xf32>,
    %c0_44 = arith.constant 0 : index
    %c4 = arith.constant 4 : index
    %48 = memref.load %arg0[%c0_44, %c4] : memref<2x8xi32, #tpu.memory_space<smem>>
    %49 = arith.index_cast %48 : i32 to index
    %c0_45 = arith.constant 0 : index
    %50 = vector.load %arg1[%49, %c0_45] : memref<51x96xf32, #tpu.memory_space<vmem>>, vector<1x96xf32>
    %c4_46 = arith.constant 4 : index
    %c0_47 = arith.constant 0 : index
    %c0_48 = arith.constant 0 : index
    %51 = vector.load %arg7[%c4_46, %c0_47, %c0_48] : memref<8x2x96xf32, #tpu.memory_space<vmem>>, vector<1x1x96xf32>
    %52 = vector.shape_cast %51 : vector<1x1x96xf32> to vector<1x96xf32>
    %53 = vector.shape_cast %50 : vector<1x96xf32> to vector<1x1x96xf32>
    tpu.vector_store %arg7[%c4_46, %c0_47, %c0_48], %53 {strides = array<i32>} : memref<8x2x96xf32, #tpu.memory_space<vmem>>, vector<1x1x96xf32>,
    %c1_49 = arith.constant 1 : index
    %c4_50 = arith.constant 4 : index
    %54 = memref.load %arg0[%c1_49, %c4_50] : memref<2x8xi32, #tpu.memory_space<smem>>
    %55 = arith.index_cast %54 : i32 to index
    %c0_51 = arith.constant 0 : index
    %56 = vector.load %arg1[%55, %c0_51] : memref<51x96xf32, #tpu.memory_space<vmem>>, vector<1x96xf32>
    %c4_52 = arith.constant 4 : index
    %c1_53 = arith.constant 1 : index
    %c0_54 = arith.constant 0 : index
    %57 = vector.load %arg7[%c4_52, %c1_53, %c0_54] : memref<8x2x96xf32, #tpu.memory_space<vmem>>, vector<1x1x96xf32>
    %58 = vector.shape_cast %57 : vector<1x1x96xf32> to vector<1x96xf32>
    %59 = vector.shape_cast %56 : vector<1x96xf32> to vector<1x1x96xf32>
    tpu.vector_store %arg7[%c4_52, %c1_53, %c0_54], %59 {strides = array<i32>} : memref<8x2x96xf32, #tpu.memory_space<vmem>>, vector<1x1x96xf32>,
    %c0_55 = arith.constant 0 : index
    %c5 = arith.constant 5 : index
    %60 = memref.load %arg0[%c0_55, %c5] : memref<2x8xi32, #tpu.memory_space<smem>>
    %61 = arith.index_cast %60 : i32 to index
    %c0_56 = arith.constant 0 : index
    %62 = vector.load %arg1[%61, %c0_56] : memref<51x96xf32, #tpu.memory_space<vmem>>, vector<1x96xf32>
    %c5_57 = arith.constant 5 : index
    %c0_58 = arith.constant 0 : index
    %c0_59 = arith.constant 0 : index
    %63 = vector.load %arg7[%c5_57, %c0_58, %c0_59] : memref<8x2x96xf32, #tpu.memory_space<vmem>>, vector<1x1x96xf32>
    %64 = vector.shape_cast %63 : vector<1x1x96xf32> to vector<1x96xf32>
    %65 = vector.shape_cast %62 : vector<1x96xf32> to vector<1x1x96xf32>
    tpu.vector_store %arg7[%c5_57, %c0_58, %c0_59], %65 {strides = array<i32>} : memref<8x2x96xf32, #tpu.memory_space<vmem>>, vector<1x1x96xf32>,
    %c1_60 = arith.constant 1 : index
    %c5_61 = arith.constant 5 : index
    %66 = memref.load %arg0[%c1_60, %c5_61] : memref<2x8xi32, #tpu.memory_space<smem>>
    %67 = arith.index_cast %66 : i32 to index
    %c0_62 = arith.constant 0 : index
    %68 = vector.load %arg1[%67, %c0_62] : memref<51x96xf32, #tpu.memory_space<vmem>>, vector<1x96xf32>
    %c5_63 = arith.constant 5 : index
    %c1_64 = arith.constant 1 : index
    %c0_65 = arith.constant 0 : index
    %69 = vector.load %arg7[%c5_63, %c1_64, %c0_65] : memref<8x2x96xf32, #tpu.memory_space<vmem>>, vector<1x1x96xf32>
    %70 = vector.shape_cast %69 : vector<1x1x96xf32> to vector<1x96xf32>
    %71 = vector.shape_cast %68 : vector<1x96xf32> to vector<1x1x96xf32>
    tpu.vector_store %arg7[%c5_63, %c1_64, %c0_65], %71 {strides = array<i32>} : memref<8x2x96xf32, #tpu.memory_space<vmem>>, vector<1x1x96xf32>,
    %c0_66 = arith.constant 0 : index
    %c6 = arith.constant 6 : index
    %72 = memref.load %arg0[%c0_66, %c6] : memref<2x8xi32, #tpu.memory_space<smem>>
    %73 = arith.index_cast %72 : i32 to index
    %c0_67 = arith.constant 0 : index
    %74 = vector.load %arg1[%73, %c0_67] : memref<51x96xf32, #tpu.memory_space<vmem>>, vector<1x96xf32>
    %c6_68 = arith.constant 6 : index
    %c0_69 = arith.constant 0 : index
    %c0_70 = arith.constant 0 : index
    %75 = vector.load %arg7[%c6_68, %c0_69, %c0_70] : memref<8x2x96xf32, #tpu.memory_space<vmem>>, vector<1x1x96xf32>
    %76 = vector.shape_cast %75 : vector<1x1x96xf32> to vector<1x96xf32>
    %77 = vector.shape_cast %74 : vector<1x96xf32> to vector<1x1x96xf32>
    tpu.vector_store %arg7[%c6_68, %c0_69, %c0_70], %77 {strides = array<i32>} : memref<8x2x96xf32, #tpu.memory_space<vmem>>, vector<1x1x96xf32>,
    %c1_71 = arith.constant 1 : index
    %c6_72 = arith.constant 6 : index
    %78 = memref.load %arg0[%c1_71, %c6_72] : memref<2x8xi32, #tpu.memory_space<smem>>
    %79 = arith.index_cast %78 : i32 to index
    %c0_73 = arith.constant 0 : index
    %80 = vector.load %arg1[%79, %c0_73] : memref<51x96xf32, #tpu.memory_space<vmem>>, vector<1x96xf32>
    %c6_74 = arith.constant 6 : index
    %c1_75 = arith.constant 1 : index
    %c0_76 = arith.constant 0 : index
    %81 = vector.load %arg7[%c6_74, %c1_75, %c0_76] : memref<8x2x96xf32, #tpu.memory_space<vmem>>, vector<1x1x96xf32>
    %82 = vector.shape_cast %81 : vector<1x1x96xf32> to vector<1x96xf32>
    %83 = vector.shape_cast %80 : vector<1x96xf32> to vector<1x1x96xf32>
    tpu.vector_store %arg7[%c6_74, %c1_75, %c0_76], %83 {strides = array<i32>} : memref<8x2x96xf32, #tpu.memory_space<vmem>>, vector<1x1x96xf32>,
    %c0_77 = arith.constant 0 : index
    %c7 = arith.constant 7 : index
    %84 = memref.load %arg0[%c0_77, %c7] : memref<2x8xi32, #tpu.memory_space<smem>>
    %85 = arith.index_cast %84 : i32 to index
    %c0_78 = arith.constant 0 : index
    %86 = vector.load %arg1[%85, %c0_78] : memref<51x96xf32, #tpu.memory_space<vmem>>, vector<1x96xf32>
    %c7_79 = arith.constant 7 : index
    %c0_80 = arith.constant 0 : index
    %c0_81 = arith.constant 0 : index
    %87 = vector.load %arg7[%c7_79, %c0_80, %c0_81] : memref<8x2x96xf32, #tpu.memory_space<vmem>>, vector<1x1x96xf32>
    %88 = vector.shape_cast %87 : vector<1x1x96xf32> to vector<1x96xf32>
    %89 = vector.shape_cast %86 : vector<1x96xf32> to vector<1x1x96xf32>
    tpu.vector_store %arg7[%c7_79, %c0_80, %c0_81], %89 {strides = array<i32>} : memref<8x2x96xf32, #tpu.memory_space<vmem>>, vector<1x1x96xf32>,
    %c1_82 = arith.constant 1 : index
    %c7_83 = arith.constant 7 : index
    %90 = memref.load %arg0[%c1_82, %c7_83] : memref<2x8xi32, #tpu.memory_space<smem>>
    %91 = arith.index_cast %90 : i32 to index
    %c0_84 = arith.constant 0 : index
    %92 = vector.load %arg1[%91, %c0_84] : memref<51x96xf32, #tpu.memory_space<vmem>>, vector<1x96xf32>
    %c7_85 = arith.constant 7 : index
    %c1_86 = arith.constant 1 : index
    %c0_87 = arith.constant 0 : index
    %93 = vector.load %arg7[%c7_85, %c1_86, %c0_87] : memref<8x2x96xf32, #tpu.memory_space<vmem>>, vector<1x1x96xf32>
    %94 = vector.shape_cast %93 : vector<1x1x96xf32> to vector<1x96xf32>
    %95 = vector.shape_cast %92 : vector<1x96xf32> to vector<1x1x96xf32>
    tpu.vector_store %arg7[%c7_85, %c1_86, %c0_87], %95 {strides = array<i32>} : memref<8x2x96xf32, #tpu.memory_space<vmem>>, vector<1x1x96xf32>,
    %c0_88 = arith.constant 0 : index
    %c0_89 = arith.constant 0 : index
    %96 = vector.load %arg2[%c0_88, %c0_89] : memref<32x96xf32, #tpu.memory_space<vmem>>, vector<32x96xf32>
    %c0_90 = arith.constant 0 : index
    %c0_91 = arith.constant 0 : index
    %97 = vector.load %arg3[%c0_90, %c0_91] : memref<1x32xf32, #tpu.memory_space<vmem>>, vector<1x32xf32>
    %cst = arith.constant 0.000000e+00 : f32
    %98 = vector.broadcast %cst : f32 to vector<2x32xf32>
    %c0_i32 = arith.constant 0 : i32
    %99 = arith.index_cast %c0_i32 : i32 to index
    %c0_92 = arith.constant 0 : index
    %c0_93 = arith.constant 0 : index
    %100 = vector.load %arg7[%99, %c0_92, %c0_93] : memref<8x2x96xf32, #tpu.memory_space<vmem>>, vector<1x2x96xf32>
    %101 = vector.shape_cast %100 : vector<1x2x96xf32> to vector<2x96xf32>
    %cst_94 = arith.constant dense<0.000000e+00> : vector<2x96xf32>
    %102 = tpu.matmul %98, %96, %cst_94 {dimension_numbers = #tpu.dot_dimension_numbers<[1], [0], [0], [1], [0, 0, 1, 1], [], []>} : vector<2x32xf32>, vector<32x96xf32>, vector<2x96xf32> -> vector<2x96xf32>
    %103 = vector.extract_strided_slice %101 {offsets = [0, 0], sizes = [2, 32], strides = [1, 1]} : vector<2x96xf32> to vector<2x32xf32>
    %104 = vector.extract_strided_slice %102 {offsets = [0, 0], sizes = [2, 32], strides = [1, 1]} : vector<2x96xf32> to vector<2x32xf32>
    %105 = arith.addf %103, %104 : vector<2x32xf32>
    %106 = arith.negf %105 : vector<2x32xf32>
    %107 = math.exp %106 : vector<2x32xf32>
    %cst_95 = arith.constant 1.000000e+00 : f32
    %108 = vector.broadcast %cst_95 : f32 to vector<2x32xf32>
    %109 = arith.addf %108, %107 : vector<2x32xf32>
    %110 = arith.divf %108, %109 : vector<2x32xf32>
    %111 = vector.extract_strided_slice %101 {offsets = [0, 32], sizes = [2, 32], strides = [1, 1]} : vector<2x96xf32> to vector<2x32xf32>
    %112 = vector.extract_strided_slice %102 {offsets = [0, 32], sizes = [2, 32], strides = [1, 1]} : vector<2x96xf32> to vector<2x32xf32>
    %113 = arith.addf %111, %112 : vector<2x32xf32>
    %114 = arith.negf %113 : vector<2x32xf32>
    %115 = math.exp %114 : vector<2x32xf32>
    %cst_96 = arith.constant 1.000000e+00 : f32
    %116 = vector.broadcast %cst_96 : f32 to vector<2x32xf32>
    %117 = arith.addf %116, %115 : vector<2x32xf32>
    %118 = arith.divf %116, %117 : vector<2x32xf32>
    %119 = vector.extract_strided_slice %101 {offsets = [0, 64], sizes = [2, 32], strides = [1, 1]} : vector<2x96xf32> to vector<2x32xf32>
    %120 = vector.extract_strided_slice %102 {offsets = [0, 64], sizes = [2, 32], strides = [1, 1]} : vector<2x96xf32> to vector<2x32xf32>
    %121 = vector.broadcast %97 : vector<1x32xf32> to vector<2x32xf32>
    %122 = arith.addf %120, %121 : vector<2x32xf32>
    %123 = arith.mulf %110, %122 : vector<2x32xf32>
    %124 = arith.addf %119, %123 : vector<2x32xf32>
    %125 = math.tanh %124 : vector<2x32xf32>
    %cst_97 = arith.constant 1.000000e+00 : f32
    %126 = vector.broadcast %cst_97 : f32 to vector<2x32xf32>
    %127 = arith.subf %126, %118 : vector<2x32xf32>
    %128 = arith.mulf %127, %125 : vector<2x32xf32>
    %129 = arith.mulf %118, %98 : vector<2x32xf32>
    %130 = arith.addf %128, %129 : vector<2x32xf32>
    %c1_i32 = arith.constant 1 : i32
    %131 = arith.index_cast %c1_i32 : i32 to index
    %c0_98 = arith.constant 0 : index
    %c0_99 = arith.constant 0 : index
    %132 = vector.load %arg7[%131, %c0_98, %c0_99] : memref<8x2x96xf32, #tpu.memory_space<vmem>>, vector<1x2x96xf32>
    %133 = vector.shape_cast %132 : vector<1x2x96xf32> to vector<2x96xf32>
    %cst_100 = arith.constant dense<0.000000e+00> : vector<2x96xf32>
    %134 = tpu.matmul %130, %96, %cst_100 {dimension_numbers = #tpu.dot_dimension_numbers<[1], [0], [0], [1], [0, 0, 1, 1], [], []>} : vector<2x32xf32>, vector<32x96xf32>, vector<2x96xf32> -> vector<2x96xf32>
    %135 = vector.extract_strided_slice %133 {offsets = [0, 0], sizes = [2, 32], strides = [1, 1]} : vector<2x96xf32> to vector<2x32xf32>
    %136 = vector.extract_strided_slice %134 {offsets = [0, 0], sizes = [2, 32], strides = [1, 1]} : vector<2x96xf32> to vector<2x32xf32>
    %137 = arith.addf %135, %136 : vector<2x32xf32>
    %138 = arith.negf %137 : vector<2x32xf32>
    %139 = math.exp %138 : vector<2x32xf32>
    %cst_101 = arith.constant 1.000000e+00 : f32
    %140 = vector.broadcast %cst_101 : f32 to vector<2x32xf32>
    %141 = arith.addf %140, %139 : vector<2x32xf32>
    %142 = arith.divf %140, %141 : vector<2x32xf32>
    %143 = vector.extract_strided_slice %133 {offsets = [0, 32], sizes = [2, 32], strides = [1, 1]} : vector<2x96xf32> to vector<2x32xf32>
    %144 = vector.extract_strided_slice %134 {offsets = [0, 32], sizes = [2, 32], strides = [1, 1]} : vector<2x96xf32> to vector<2x32xf32>
    %145 = arith.addf %143, %144 : vector<2x32xf32>
    %146 = arith.negf %145 : vector<2x32xf32>
    %147 = math.exp %146 : vector<2x32xf32>
    %cst_102 = arith.constant 1.000000e+00 : f32
    %148 = vector.broadcast %cst_102 : f32 to vector<2x32xf32>
    %149 = arith.addf %148, %147 : vector<2x32xf32>
    %150 = arith.divf %148, %149 : vector<2x32xf32>
    %151 = vector.extract_strided_slice %133 {offsets = [0, 64], sizes = [2, 32], strides = [1, 1]} : vector<2x96xf32> to vector<2x32xf32>
    %152 = vector.extract_strided_slice %134 {offsets = [0, 64], sizes = [2, 32], strides = [1, 1]} : vector<2x96xf32> to vector<2x32xf32>
    %153 = vector.broadcast %97 : vector<1x32xf32> to vector<2x32xf32>
    %154 = arith.addf %152, %153 : vector<2x32xf32>
    %155 = arith.mulf %142, %154 : vector<2x32xf32>
    %156 = arith.addf %151, %155 : vector<2x32xf32>
    %157 = math.tanh %156 : vector<2x32xf32>
    %cst_103 = arith.constant 1.000000e+00 : f32
    %158 = vector.broadcast %cst_103 : f32 to vector<2x32xf32>
    %159 = arith.subf %158, %150 : vector<2x32xf32>
    %160 = arith.mulf %159, %157 : vector<2x32xf32>
    %161 = arith.mulf %150, %130 : vector<2x32xf32>
    %162 = arith.addf %160, %161 : vector<2x32xf32>
    %c2_i32 = arith.constant 2 : i32
    %163 = arith.index_cast %c2_i32 : i32 to index
    %c0_104 = arith.constant 0 : index
    %c0_105 = arith.constant 0 : index
    %164 = vector.load %arg7[%163, %c0_104, %c0_105] : memref<8x2x96xf32, #tpu.memory_space<vmem>>, vector<1x2x96xf32>
    %165 = vector.shape_cast %164 : vector<1x2x96xf32> to vector<2x96xf32>
    %cst_106 = arith.constant dense<0.000000e+00> : vector<2x96xf32>
    %166 = tpu.matmul %162, %96, %cst_106 {dimension_numbers = #tpu.dot_dimension_numbers<[1], [0], [0], [1], [0, 0, 1, 1], [], []>} : vector<2x32xf32>, vector<32x96xf32>, vector<2x96xf32> -> vector<2x96xf32>
    %167 = vector.extract_strided_slice %165 {offsets = [0, 0], sizes = [2, 32], strides = [1, 1]} : vector<2x96xf32> to vector<2x32xf32>
    %168 = vector.extract_strided_slice %166 {offsets = [0, 0], sizes = [2, 32], strides = [1, 1]} : vector<2x96xf32> to vector<2x32xf32>
    %169 = arith.addf %167, %168 : vector<2x32xf32>
    %170 = arith.negf %169 : vector<2x32xf32>
    %171 = math.exp %170 : vector<2x32xf32>
    %cst_107 = arith.constant 1.000000e+00 : f32
    %172 = vector.broadcast %cst_107 : f32 to vector<2x32xf32>
    %173 = arith.addf %172, %171 : vector<2x32xf32>
    %174 = arith.divf %172, %173 : vector<2x32xf32>
    %175 = vector.extract_strided_slice %165 {offsets = [0, 32], sizes = [2, 32], strides = [1, 1]} : vector<2x96xf32> to vector<2x32xf32>
    %176 = vector.extract_strided_slice %166 {offsets = [0, 32], sizes = [2, 32], strides = [1, 1]} : vector<2x96xf32> to vector<2x32xf32>
    %177 = arith.addf %175, %176 : vector<2x32xf32>
    %178 = arith.negf %177 : vector<2x32xf32>
    %179 = math.exp %178 : vector<2x32xf32>
    %cst_108 = arith.constant 1.000000e+00 : f32
    %180 = vector.broadcast %cst_108 : f32 to vector<2x32xf32>
    %181 = arith.addf %180, %179 : vector<2x32xf32>
    %182 = arith.divf %180, %181 : vector<2x32xf32>
    %183 = vector.extract_strided_slice %165 {offsets = [0, 64], sizes = [2, 32], strides = [1, 1]} : vector<2x96xf32> to vector<2x32xf32>
    %184 = vector.extract_strided_slice %166 {offsets = [0, 64], sizes = [2, 32], strides = [1, 1]} : vector<2x96xf32> to vector<2x32xf32>
    %185 = vector.broadcast %97 : vector<1x32xf32> to vector<2x32xf32>
    %186 = arith.addf %184, %185 : vector<2x32xf32>
    %187 = arith.mulf %174, %186 : vector<2x32xf32>
    %188 = arith.addf %183, %187 : vector<2x32xf32>
    %189 = math.tanh %188 : vector<2x32xf32>
    %cst_109 = arith.constant 1.000000e+00 : f32
    %190 = vector.broadcast %cst_109 : f32 to vector<2x32xf32>
    %191 = arith.subf %190, %182 : vector<2x32xf32>
    %192 = arith.mulf %191, %189 : vector<2x32xf32>
    %193 = arith.mulf %182, %162 : vector<2x32xf32>
    %194 = arith.addf %192, %193 : vector<2x32xf32>
    %c3_i32 = arith.constant 3 : i32
    %195 = arith.index_cast %c3_i32 : i32 to index
    %c0_110 = arith.constant 0 : index
    %c0_111 = arith.constant 0 : index
    %196 = vector.load %arg7[%195, %c0_110, %c0_111] : memref<8x2x96xf32, #tpu.memory_space<vmem>>, vector<1x2x96xf32>
    %197 = vector.shape_cast %196 : vector<1x2x96xf32> to vector<2x96xf32>
    %cst_112 = arith.constant dense<0.000000e+00> : vector<2x96xf32>
    %198 = tpu.matmul %194, %96, %cst_112 {dimension_numbers = #tpu.dot_dimension_numbers<[1], [0], [0], [1], [0, 0, 1, 1], [], []>} : vector<2x32xf32>, vector<32x96xf32>, vector<2x96xf32> -> vector<2x96xf32>
    %199 = vector.extract_strided_slice %197 {offsets = [0, 0], sizes = [2, 32], strides = [1, 1]} : vector<2x96xf32> to vector<2x32xf32>
    %200 = vector.extract_strided_slice %198 {offsets = [0, 0], sizes = [2, 32], strides = [1, 1]} : vector<2x96xf32> to vector<2x32xf32>
    %201 = arith.addf %199, %200 : vector<2x32xf32>
    %202 = arith.negf %201 : vector<2x32xf32>
    %203 = math.exp %202 : vector<2x32xf32>
    %cst_113 = arith.constant 1.000000e+00 : f32
    %204 = vector.broadcast %cst_113 : f32 to vector<2x32xf32>
    %205 = arith.addf %204, %203 : vector<2x32xf32>
    %206 = arith.divf %204, %205 : vector<2x32xf32>
    %207 = vector.extract_strided_slice %197 {offsets = [0, 32], sizes = [2, 32], strides = [1, 1]} : vector<2x96xf32> to vector<2x32xf32>
    %208 = vector.extract_strided_slice %198 {offsets = [0, 32], sizes = [2, 32], strides = [1, 1]} : vector<2x96xf32> to vector<2x32xf32>
    %209 = arith.addf %207, %208 : vector<2x32xf32>
    %210 = arith.negf %209 : vector<2x32xf32>
    %211 = math.exp %210 : vector<2x32xf32>
    %cst_114 = arith.constant 1.000000e+00 : f32
    %212 = vector.broadcast %cst_114 : f32 to vector<2x32xf32>
    %213 = arith.addf %212, %211 : vector<2x32xf32>
    %214 = arith.divf %212, %213 : vector<2x32xf32>
    %215 = vector.extract_strided_slice %197 {offsets = [0, 64], sizes = [2, 32], strides = [1, 1]} : vector<2x96xf32> to vector<2x32xf32>
    %216 = vector.extract_strided_slice %198 {offsets = [0, 64], sizes = [2, 32], strides = [1, 1]} : vector<2x96xf32> to vector<2x32xf32>
    %217 = vector.broadcast %97 : vector<1x32xf32> to vector<2x32xf32>
    %218 = arith.addf %216, %217 : vector<2x32xf32>
    %219 = arith.mulf %206, %218 : vector<2x32xf32>
    %220 = arith.addf %215, %219 : vector<2x32xf32>
    %221 = math.tanh %220 : vector<2x32xf32>
    %cst_115 = arith.constant 1.000000e+00 : f32
    %222 = vector.broadcast %cst_115 : f32 to vector<2x32xf32>
    %223 = arith.subf %222, %214 : vector<2x32xf32>
    %224 = arith.mulf %223, %221 : vector<2x32xf32>
    %225 = arith.mulf %214, %194 : vector<2x32xf32>
    %226 = arith.addf %224, %225 : vector<2x32xf32>
    %c4_i32 = arith.constant 4 : i32
    %227 = arith.index_cast %c4_i32 : i32 to index
    %c0_116 = arith.constant 0 : index
    %c0_117 = arith.constant 0 : index
    %228 = vector.load %arg7[%227, %c0_116, %c0_117] : memref<8x2x96xf32, #tpu.memory_space<vmem>>, vector<1x2x96xf32>
    %229 = vector.shape_cast %228 : vector<1x2x96xf32> to vector<2x96xf32>
    %cst_118 = arith.constant dense<0.000000e+00> : vector<2x96xf32>
    %230 = tpu.matmul %226, %96, %cst_118 {dimension_numbers = #tpu.dot_dimension_numbers<[1], [0], [0], [1], [0, 0, 1, 1], [], []>} : vector<2x32xf32>, vector<32x96xf32>, vector<2x96xf32> -> vector<2x96xf32>
    %231 = vector.extract_strided_slice %229 {offsets = [0, 0], sizes = [2, 32], strides = [1, 1]} : vector<2x96xf32> to vector<2x32xf32>
    %232 = vector.extract_strided_slice %230 {offsets = [0, 0], sizes = [2, 32], strides = [1, 1]} : vector<2x96xf32> to vector<2x32xf32>
    %233 = arith.addf %231, %232 : vector<2x32xf32>
    %234 = arith.negf %233 : vector<2x32xf32>
    %235 = math.exp %234 : vector<2x32xf32>
    %cst_119 = arith.constant 1.000000e+00 : f32
    %236 = vector.broadcast %cst_119 : f32 to vector<2x32xf32>
    %237 = arith.addf %236, %235 : vector<2x32xf32>
    %238 = arith.divf %236, %237 : vector<2x32xf32>
    %239 = vector.extract_strided_slice %229 {offsets = [0, 32], sizes = [2, 32], strides = [1, 1]} : vector<2x96xf32> to vector<2x32xf32>
    %240 = vector.extract_strided_slice %230 {offsets = [0, 32], sizes = [2, 32], strides = [1, 1]} : vector<2x96xf32> to vector<2x32xf32>
    %241 = arith.addf %239, %240 : vector<2x32xf32>
    %242 = arith.negf %241 : vector<2x32xf32>
    %243 = math.exp %242 : vector<2x32xf32>
    %cst_120 = arith.constant 1.000000e+00 : f32
    %244 = vector.broadcast %cst_120 : f32 to vector<2x32xf32>
    %245 = arith.addf %244, %243 : vector<2x32xf32>
    %246 = arith.divf %244, %245 : vector<2x32xf32>
    %247 = vector.extract_strided_slice %229 {offsets = [0, 64], sizes = [2, 32], strides = [1, 1]} : vector<2x96xf32> to vector<2x32xf32>
    %248 = vector.extract_strided_slice %230 {offsets = [0, 64], sizes = [2, 32], strides = [1, 1]} : vector<2x96xf32> to vector<2x32xf32>
    %249 = vector.broadcast %97 : vector<1x32xf32> to vector<2x32xf32>
    %250 = arith.addf %248, %249 : vector<2x32xf32>
    %251 = arith.mulf %238, %250 : vector<2x32xf32>
    %252 = arith.addf %247, %251 : vector<2x32xf32>
    %253 = math.tanh %252 : vector<2x32xf32>
    %cst_121 = arith.constant 1.000000e+00 : f32
    %254 = vector.broadcast %cst_121 : f32 to vector<2x32xf32>
    %255 = arith.subf %254, %246 : vector<2x32xf32>
    %256 = arith.mulf %255, %253 : vector<2x32xf32>
    %257 = arith.mulf %246, %226 : vector<2x32xf32>
    %258 = arith.addf %256, %257 : vector<2x32xf32>
    %c5_i32 = arith.constant 5 : i32
    %259 = arith.index_cast %c5_i32 : i32 to index
    %c0_122 = arith.constant 0 : index
    %c0_123 = arith.constant 0 : index
    %260 = vector.load %arg7[%259, %c0_122, %c0_123] : memref<8x2x96xf32, #tpu.memory_space<vmem>>, vector<1x2x96xf32>
    %261 = vector.shape_cast %260 : vector<1x2x96xf32> to vector<2x96xf32>
    %cst_124 = arith.constant dense<0.000000e+00> : vector<2x96xf32>
    %262 = tpu.matmul %258, %96, %cst_124 {dimension_numbers = #tpu.dot_dimension_numbers<[1], [0], [0], [1], [0, 0, 1, 1], [], []>} : vector<2x32xf32>, vector<32x96xf32>, vector<2x96xf32> -> vector<2x96xf32>
    %263 = vector.extract_strided_slice %261 {offsets = [0, 0], sizes = [2, 32], strides = [1, 1]} : vector<2x96xf32> to vector<2x32xf32>
    %264 = vector.extract_strided_slice %262 {offsets = [0, 0], sizes = [2, 32], strides = [1, 1]} : vector<2x96xf32> to vector<2x32xf32>
    %265 = arith.addf %263, %264 : vector<2x32xf32>
    %266 = arith.negf %265 : vector<2x32xf32>
    %267 = math.exp %266 : vector<2x32xf32>
    %cst_125 = arith.constant 1.000000e+00 : f32
    %268 = vector.broadcast %cst_125 : f32 to vector<2x32xf32>
    %269 = arith.addf %268, %267 : vector<2x32xf32>
    %270 = arith.divf %268, %269 : vector<2x32xf32>
    %271 = vector.extract_strided_slice %261 {offsets = [0, 32], sizes = [2, 32], strides = [1, 1]} : vector<2x96xf32> to vector<2x32xf32>
    %272 = vector.extract_strided_slice %262 {offsets = [0, 32], sizes = [2, 32], strides = [1, 1]} : vector<2x96xf32> to vector<2x32xf32>
    %273 = arith.addf %271, %272 : vector<2x32xf32>
    %274 = arith.negf %273 : vector<2x32xf32>
    %275 = math.exp %274 : vector<2x32xf32>
    %cst_126 = arith.constant 1.000000e+00 : f32
    %276 = vector.broadcast %cst_126 : f32 to vector<2x32xf32>
    %277 = arith.addf %276, %275 : vector<2x32xf32>
    %278 = arith.divf %276, %277 : vector<2x32xf32>
    %279 = vector.extract_strided_slice %261 {offsets = [0, 64], sizes = [2, 32], strides = [1, 1]} : vector<2x96xf32> to vector<2x32xf32>
    %280 = vector.extract_strided_slice %262 {offsets = [0, 64], sizes = [2, 32], strides = [1, 1]} : vector<2x96xf32> to vector<2x32xf32>
    %281 = vector.broadcast %97 : vector<1x32xf32> to vector<2x32xf32>
    %282 = arith.addf %280, %281 : vector<2x32xf32>
    %283 = arith.mulf %270, %282 : vector<2x32xf32>
    %284 = arith.addf %279, %283 : vector<2x32xf32>
    %285 = math.tanh %284 : vector<2x32xf32>
    %cst_127 = arith.constant 1.000000e+00 : f32
    %286 = vector.broadcast %cst_127 : f32 to vector<2x32xf32>
    %287 = arith.subf %286, %278 : vector<2x32xf32>
    %288 = arith.mulf %287, %285 : vector<2x32xf32>
    %289 = arith.mulf %278, %258 : vector<2x32xf32>
    %290 = arith.addf %288, %289 : vector<2x32xf32>
    %c6_i32 = arith.constant 6 : i32
    %291 = arith.index_cast %c6_i32 : i32 to index
    %c0_128 = arith.constant 0 : index
    %c0_129 = arith.constant 0 : index
    %292 = vector.load %arg7[%291, %c0_128, %c0_129] : memref<8x2x96xf32, #tpu.memory_space<vmem>>, vector<1x2x96xf32>
    %293 = vector.shape_cast %292 : vector<1x2x96xf32> to vector<2x96xf32>
    %cst_130 = arith.constant dense<0.000000e+00> : vector<2x96xf32>
    %294 = tpu.matmul %290, %96, %cst_130 {dimension_numbers = #tpu.dot_dimension_numbers<[1], [0], [0], [1], [0, 0, 1, 1], [], []>} : vector<2x32xf32>, vector<32x96xf32>, vector<2x96xf32> -> vector<2x96xf32>
    %295 = vector.extract_strided_slice %293 {offsets = [0, 0], sizes = [2, 32], strides = [1, 1]} : vector<2x96xf32> to vector<2x32xf32>
    %296 = vector.extract_strided_slice %294 {offsets = [0, 0], sizes = [2, 32], strides = [1, 1]} : vector<2x96xf32> to vector<2x32xf32>
    %297 = arith.addf %295, %296 : vector<2x32xf32>
    %298 = arith.negf %297 : vector<2x32xf32>
    %299 = math.exp %298 : vector<2x32xf32>
    %cst_131 = arith.constant 1.000000e+00 : f32
    %300 = vector.broadcast %cst_131 : f32 to vector<2x32xf32>
    %301 = arith.addf %300, %299 : vector<2x32xf32>
    %302 = arith.divf %300, %301 : vector<2x32xf32>
    %303 = vector.extract_strided_slice %293 {offsets = [0, 32], sizes = [2, 32], strides = [1, 1]} : vector<2x96xf32> to vector<2x32xf32>
    %304 = vector.extract_strided_slice %294 {offsets = [0, 32], sizes = [2, 32], strides = [1, 1]} : vector<2x96xf32> to vector<2x32xf32>
    %305 = arith.addf %303, %304 : vector<2x32xf32>
    %306 = arith.negf %305 : vector<2x32xf32>
    %307 = math.exp %306 : vector<2x32xf32>
    %cst_132 = arith.constant 1.000000e+00 : f32
    %308 = vector.broadcast %cst_132 : f32 to vector<2x32xf32>
    %309 = arith.addf %308, %307 : vector<2x32xf32>
    %310 = arith.divf %308, %309 : vector<2x32xf32>
    %311 = vector.extract_strided_slice %293 {offsets = [0, 64], sizes = [2, 32], strides = [1, 1]} : vector<2x96xf32> to vector<2x32xf32>
    %312 = vector.extract_strided_slice %294 {offsets = [0, 64], sizes = [2, 32], strides = [1, 1]} : vector<2x96xf32> to vector<2x32xf32>
    %313 = vector.broadcast %97 : vector<1x32xf32> to vector<2x32xf32>
    %314 = arith.addf %312, %313 : vector<2x32xf32>
    %315 = arith.mulf %302, %314 : vector<2x32xf32>
    %316 = arith.addf %311, %315 : vector<2x32xf32>
    %317 = math.tanh %316 : vector<2x32xf32>
    %cst_133 = arith.constant 1.000000e+00 : f32
    %318 = vector.broadcast %cst_133 : f32 to vector<2x32xf32>
    %319 = arith.subf %318, %310 : vector<2x32xf32>
    %320 = arith.mulf %319, %317 : vector<2x32xf32>
    %321 = arith.mulf %310, %290 : vector<2x32xf32>
    %322 = arith.addf %320, %321 : vector<2x32xf32>
    %c7_i32 = arith.constant 7 : i32
    %323 = arith.index_cast %c7_i32 : i32 to index
    %c0_134 = arith.constant 0 : index
    %c0_135 = arith.constant 0 : index
    %324 = vector.load %arg7[%323, %c0_134, %c0_135] : memref<8x2x96xf32, #tpu.memory_space<vmem>>, vector<1x2x96xf32>
    %325 = vector.shape_cast %324 : vector<1x2x96xf32> to vector<2x96xf32>
    %cst_136 = arith.constant dense<0.000000e+00> : vector<2x96xf32>
    %326 = tpu.matmul %322, %96, %cst_136 {dimension_numbers = #tpu.dot_dimension_numbers<[1], [0], [0], [1], [0, 0, 1, 1], [], []>} : vector<2x32xf32>, vector<32x96xf32>, vector<2x96xf32> -> vector<2x96xf32>
    %327 = vector.extract_strided_slice %325 {offsets = [0, 0], sizes = [2, 32], strides = [1, 1]} : vector<2x96xf32> to vector<2x32xf32>
    %328 = vector.extract_strided_slice %326 {offsets = [0, 0], sizes = [2, 32], strides = [1, 1]} : vector<2x96xf32> to vector<2x32xf32>
    %329 = arith.addf %327, %328 : vector<2x32xf32>
    %330 = arith.negf %329 : vector<2x32xf32>
    %331 = math.exp %330 : vector<2x32xf32>
    %cst_137 = arith.constant 1.000000e+00 : f32
    %332 = vector.broadcast %cst_137 : f32 to vector<2x32xf32>
    %333 = arith.addf %332, %331 : vector<2x32xf32>
    %334 = arith.divf %332, %333 : vector<2x32xf32>
    %335 = vector.extract_strided_slice %325 {offsets = [0, 32], sizes = [2, 32], strides = [1, 1]} : vector<2x96xf32> to vector<2x32xf32>
    %336 = vector.extract_strided_slice %326 {offsets = [0, 32], sizes = [2, 32], strides = [1, 1]} : vector<2x96xf32> to vector<2x32xf32>
    %337 = arith.addf %335, %336 : vector<2x32xf32>
    %338 = arith.negf %337 : vector<2x32xf32>
    %339 = math.exp %338 : vector<2x32xf32>
    %cst_138 = arith.constant 1.000000e+00 : f32
    %340 = vector.broadcast %cst_138 : f32 to vector<2x32xf32>
    %341 = arith.addf %340, %339 : vector<2x32xf32>
    %342 = arith.divf %340, %341 : vector<2x32xf32>
    %343 = vector.extract_strided_slice %325 {offsets = [0, 64], sizes = [2, 32], strides = [1, 1]} : vector<2x96xf32> to vector<2x32xf32>
    %344 = vector.extract_strided_slice %326 {offsets = [0, 64], sizes = [2, 32], strides = [1, 1]} : vector<2x96xf32> to vector<2x32xf32>
    %345 = vector.broadcast %97 : vector<1x32xf32> to vector<2x32xf32>
    %346 = arith.addf %344, %345 : vector<2x32xf32>
    %347 = arith.mulf %334, %346 : vector<2x32xf32>
    %348 = arith.addf %343, %347 : vector<2x32xf32>
    %349 = math.tanh %348 : vector<2x32xf32>
    %cst_139 = arith.constant 1.000000e+00 : f32
    %350 = vector.broadcast %cst_139 : f32 to vector<2x32xf32>
    %351 = arith.subf %350, %342 : vector<2x32xf32>
    %352 = arith.mulf %351, %349 : vector<2x32xf32>
    %353 = arith.mulf %342, %322 : vector<2x32xf32>
    %354 = arith.addf %352, %353 : vector<2x32xf32>
    %c8_i32 = arith.constant 8 : i32
    %c0_140 = arith.constant 0 : index
    %c0_141 = arith.constant 0 : index
    %355 = vector.load %arg4[%c0_140, %c0_141] : memref<32x2xf32, #tpu.memory_space<vmem>>, vector<32x2xf32>
    %cst_142 = arith.constant dense<0.000000e+00> : vector<2x2xf32>
    %356 = tpu.matmul %354, %355, %cst_142 {dimension_numbers = #tpu.dot_dimension_numbers<[1], [0], [0], [1], [0, 0, 1, 1], [], []>} : vector<2x32xf32>, vector<32x2xf32>, vector<2x2xf32> -> vector<2x2xf32>
    %c0_143 = arith.constant 0 : index
    %c0_144 = arith.constant 0 : index
    %357 = vector.load %arg5[%c0_143, %c0_144] : memref<1x2xf32, #tpu.memory_space<vmem>>, vector<1x2xf32>
    %358 = vector.broadcast %357 : vector<1x2xf32> to vector<2x2xf32>
    %359 = arith.addf %356, %358 : vector<2x2xf32>
    %360 = arith.negf %359 : vector<2x2xf32>
    %361 = math.exp %360 : vector<2x2xf32>
    %cst_145 = arith.constant 1.000000e+00 : f32
    %362 = vector.broadcast %cst_145 : f32 to vector<2x2xf32>
    %363 = arith.addf %362, %361 : vector<2x2xf32>
    %364 = arith.divf %362, %363 : vector<2x2xf32>
    %c0_146 = arith.constant 0 : index
    %c0_147 = arith.constant 0 : index
    %365 = vector.load %arg6[%c0_146, %c0_147] : memref<2x2xf32, #tpu.memory_space<vmem>>, vector<2x2xf32>
    tpu.vector_store %arg6[%c0_146, %c0_147], %364 {strides = array<i32>} : memref<2x2xf32, #tpu.memory_space<vmem>>, vector<2x2xf32>,
    return
  }
}

</mosaic_0001>

<llo_original>
// kernel: quantum_nlp_forward.1
$region0: #{quantum_nlp_forward.1}
  #allocation0 [shape = 'u32[]', space=smem, size = 0x4, offset = 0x4, fixed_abs, tag = 'smem constant byte address 0x4 - core index']
  #allocation1 [shape = 'u32[72,128]{1,0:T(1,128)}', space=vmem, size = 0x9000, scoped, tag = 'internal scratch']
  #allocation2 [shape = 'f32[8,2,96]{2,1,0:T(2,128)}', space=vmem, size = 0x2000, scoped, tag = 'scratch operand']
  %s0 = inlined_call_operand.vmem [shape: s32[2,8], index: 0, kind: input, shape index: {}]
  %s1 = inlined_call_operand.hbm [shape: f32[51,96], index: 1, kind: input, shape index: {}]
  %s2 = inlined_call_operand.vmem [shape: f32[32,96], index: 2, kind: input, shape index: {}]
  %s3 = inlined_call_operand.vmem [shape: f32[1,32], index: 3, kind: input, shape index: {}]
  %s4 = inlined_call_operand.vmem [shape: f32[32,2], index: 4, kind: input, shape index: {}]
  %s5 = inlined_call_operand.vmem [shape: f32[1,2], index: 5, kind: input, shape index: {}]
  %s6 = inlined_call_operand.hbm [shape: f32[2,2], index: 6, kind: output, shape index: {}]
  %s7 = sld [smem:[#allocation0]]
  $region42: #{quantum_nlp_forward.1} parent=0
    _
  %s9 = ssub.s32 1, %s7
  %s10 = scalar_select 0, %s9, %s7
  $region1: #{quantum_nlp_forward.1} parent=0
    #allocation3 [shape = 'u8[1024]{0}', space=smem, size = 0x400, scoped, tag = 'input window, operand 0, single buffered']
    #allocation4 [shape = 's32[1]{0}', space=sflag, size = 0x4, scoped, tag = 'scoped memory for quantum_nlp_forward.1']
    #allocation5 [shape = 's32[1]{0}', space=sflag, size = 0x4, scoped, tag = 'scoped memory for quantum_nlp_forward.1']
    #allocation6 [shape = 's32[1]{0}', space=sflag, size = 0x4, scoped, tag = 'scoped memory for quantum_nlp_forward.1']
    #allocation7 [shape = 'u8[28672]{0}', space=vmem, size = 0x7000, scoped, tag = 'input window, operand 1, single buffered']
    #allocation8 [shape = 'u8[1024]{0}', space=vmem, size = 0x400, scoped, tag = 'output window, operand 0, single buffered']
    %11 = vsyncpa [#allocation6], 0
    %12 = vsyncpa [#allocation4], 0
    %13 = vsyncpa [#allocation5], 0
    // Predicated region
    $region2: #{quantum_nlp_forward.1} parent=1 // pred_check
      _
    $region3: #{quantum_nlp_forward.1} parent=1 // pred_check_branch
      %15 = sbr.rel (0) target = $region5
    $region4: #{quantum_nlp_forward.1} parent=1 // pred_region
      %17 = vsyncadd [#allocation6], 0
      %s19 = sshll.u32 %s0, 4
      %s20 = int_to_ptr.vmem [resolvable:$true] %s19
      %22 = dma.vmem_to_smem %s20, 32, [#allocation3], [#allocation6]
    $region5: #{quantum_nlp_forward.1} parent=1 // pred_fallthru
      _
    // Predicated region
    $region6: #{quantum_nlp_forward.1} parent=1 // pred_check
      _
    $region7: #{quantum_nlp_forward.1} parent=1 // pred_check_branch
      %24 = sbr.rel (0) target = $region9
    $region8: #{quantum_nlp_forward.1} parent=1 // pred_region
      %26 = vsyncadd [#allocation4], 0
      %s27 = sshll.u32 %s1, 4
      %s28 = int_to_ptr.hbm [resolvable:$true] %s27
      %s29 = sshll.u32 [#allocation7], 4
      %s30 = int_to_ptr.vmem [resolvable:$true] %s29
      %35 = dma.hbm_to_vmem [thread:$0]  %s28, 896, %s30, [#allocation4], 128, 128, 8
    $region9: #{quantum_nlp_forward.1} parent=1 // pred_fallthru
      _
    // Predicated region
    $region10: #{quantum_nlp_forward.1} parent=1 // pred_check
      _
    $region11: #{quantum_nlp_forward.1} parent=1 // pred_check_branch
      %37 = sbr.rel (0) target = $region13
    $region12: #{quantum_nlp_forward.1} parent=1 // pred_region
      _
    $region13: #{quantum_nlp_forward.1} parent=1 // pred_fallthru
      _
    // Predicated region
    $region14: #{quantum_nlp_forward.1} parent=1 // pred_check
      _
    $region15: #{quantum_nlp_forward.1} parent=1 // pred_check_branch
      %39 = sbr.rel (0) target = $region17
    $region16: #{quantum_nlp_forward.1} parent=1 // pred_region
      _
    $region17: #{quantum_nlp_forward.1} parent=1 // pred_fallthru
      _
    // Predicated region
    $region18: #{quantum_nlp_forward.1} parent=1 // pred_check
      _
    $region19: #{quantum_nlp_forward.1} parent=1 // pred_check_branch
      %41 = sbr.rel (0) target = $region21
    $region20: #{quantum_nlp_forward.1} parent=1 // pred_region
      _
    $region21: #{quantum_nlp_forward.1} parent=1 // pred_fallthru
      _
    // Predicated region
    $region22: #{quantum_nlp_forward.1} parent=1 // pred_check
      _
    $region23: #{quantum_nlp_forward.1} parent=1 // pred_check_branch
      %43 = sbr.rel (0) target = $region25
    $region24: #{quantum_nlp_forward.1} parent=1 // pred_region
      _
    $region25: #{quantum_nlp_forward.1} parent=1 // pred_fallthru
      _
    // Predicated region
    $region26: #{quantum_nlp_forward.1} parent=1 // pred_check
      _
    $region27: #{quantum_nlp_forward.1} parent=1 // pred_check_branch
      %45 = sbr.rel (0) target = $region29
    $region28: #{quantum_nlp_forward.1} parent=1 // pred_region
      %47 = dma.done [#allocation6], 32
    $region29: #{quantum_nlp_forward.1} parent=1 // pred_fallthru
      _
    // Predicated region
    $region30: #{quantum_nlp_forward.1} parent=1 // pred_check
      _
    $region31: #{quantum_nlp_forward.1} parent=1 // pred_check_branch
      %49 = sbr.rel (0) target = $region33
    $region32: #{quantum_nlp_forward.1} parent=1 // pred_region
      %51 = dma.done [#allocation4], 896
    $region33: #{quantum_nlp_forward.1} parent=1 // pred_fallthru
      _
    %52 = sfence
    %s53 = sld [smem:[#allocation3]]
    %s54 = scalar_lea.vmem [#allocation7], %s53
    %v55 = vld [vmem:[%s54] sm:$0x1]
    %vm56 = vcmask 778240
    %57 = vst.msk [vmem:[#allocation2] sm:$0x1] %vm56, %v55
    %s58 = sld [smem:[#allocation3 + $0x80]]
    %s59 = scalar_lea.vmem [#allocation7], %s58
    %v60 = vld [vmem:[%s59] sm:$0x1]
    %61 = vst.msk [vmem:[#allocation2 + $0x1] sm:$0x1] %vm56, %v60
    %s62 = sld [smem:[#allocation3 + $0x1]]
    %s63 = scalar_lea.vmem [#allocation7], %s62
    %v64 = vld [vmem:[%s63] sm:$0x1]
    %s65 = scalar_lea.vmem [#allocation2], 2
    %66 = vst.msk [vmem:[%s65] sm:$0x1] %vm56, %v64
    %s67 = sld [smem:[#allocation3 + $0x81]]
    %s68 = scalar_lea.vmem [#allocation7], %s67
    %v69 = vld [vmem:[%s68] sm:$0x1]
    %70 = vst.msk [vmem:[%s65 + $0x1] sm:$0x1] %vm56, %v69
    %s71 = sld [smem:[#allocation3 + $0x2]]
    %s72 = scalar_lea.vmem [#allocation7], %s71
    %v73 = vld [vmem:[%s72] sm:$0x1]
    %s74 = scalar_lea.vmem [#allocation2], 4
    %75 = vst.msk [vmem:[%s74] sm:$0x1] %vm56, %v73
    %s76 = sld [smem:[#allocation3 + $0x82]]
    %s77 = scalar_lea.vmem [#allocation7], %s76
    %v78 = vld [vmem:[%s77] sm:$0x1]
    %79 = vst.msk [vmem:[%s74 + $0x1] sm:$0x1] %vm56, %v78
    %s80 = sld [smem:[#allocation3 + $0x3]]
    %s81 = scalar_lea.vmem [#allocation7], %s80
    %v82 = vld [vmem:[%s81] sm:$0x1]
    %s83 = scalar_lea.vmem [#allocation2], 6
    %84 = vst.msk [vmem:[%s83] sm:$0x1] %vm56, %v82
    %s85 = sld [smem:[#allocation3 + $0x83]]
    %s86 = scalar_lea.vmem [#allocation7], %s85
    %v87 = vld [vmem:[%s86] sm:$0x1]
    %88 = vst.msk [vmem:[%s83 + $0x1] sm:$0x1] %vm56, %v87
    %s89 = sld [smem:[#allocation3 + $0x4]]
    %s90 = scalar_lea.vmem [#allocation7], %s89
    %v91 = vld [vmem:[%s90] sm:$0x1]
    %s92 = scalar_lea.vmem [#allocation2], 8
    %93 = vst.msk [vmem:[%s92] sm:$0x1] %vm56, %v91
    %s94 = sld [smem:[#allocation3 + $0x84]]
    %s95 = scalar_lea.vmem [#allocation7], %s94
    %v96 = vld [vmem:[%s95] sm:$0x1]
    %97 = vst.msk [vmem:[%s92 + $0x1] sm:$0x1] %vm56, %v96
    %s98 = sld [smem:[#allocation3 + $0x5]]
    %s99 = scalar_lea.vmem [#allocation7], %s98
    %v100 = vld [vmem:[%s99] sm:$0x1]
    %s101 = scalar_lea.vmem [#allocation2], 10
    %102 = vst.msk [vmem:[%s101] sm:$0x1] %vm56, %v100
    %s103 = sld [smem:[#allocation3 + $0x85]]
    %s104 = scalar_lea.vmem [#allocation7], %s103
    %v105 = vld [vmem:[%s104] sm:$0x1]
    %106 = vst.msk [vmem:[%s101 + $0x1] sm:$0x1] %vm56, %v105
    %s107 = sld [smem:[#allocation3 + $0x6]]
    %s108 = scalar_lea.vmem [#allocation7], %s107
    %v109 = vld [vmem:[%s108] sm:$0x1]
    %s110 = scalar_lea.vmem [#allocation2], 12
    %111 = vst.msk [vmem:[%s110] sm:$0x1] %vm56, %v109
    %s112 = sld [smem:[#allocation3 + $0x86]]
    %s113 = scalar_lea.vmem [#allocation7], %s112
    %v114 = vld [vmem:[%s113] sm:$0x1]
    %115 = vst.msk [vmem:[%s110 + $0x1] sm:$0x1] %vm56, %v114
    %s116 = sld [smem:[#allocation3 + $0x7]]
    %s117 = scalar_lea.vmem [#allocation7], %s116
    %v118 = vld [vmem:[%s117] sm:$0x1]
    %s119 = scalar_lea.vmem [#allocation2], 14
    %120 = vst.msk [vmem:[%s119] sm:$0x1] %vm56, %v118
    %s121 = sld [smem:[#allocation3 + $0x87]]
    %s122 = scalar_lea.vmem [#allocation7], %s121
    %v123 = vld [vmem:[%s122] sm:$0x1]
    %124 = vst.msk [vmem:[%s119 + $0x1] sm:$0x1] %vm56, %v123
    %v125 = vld [vmem:[%s2] sm:$0xff]
    %v126 = vld [vmem:[%s2 + $0x8] sm:$0xff]
    %v127 = vld [vmem:[%s2 + $0x10] sm:$0xff]
    %v128 = vld [vmem:[%s2 + $0x18] sm:$0xff]
    %v129 = vld [vmem:[%s3] sm:$0x1]
    %v130 = vld [vmem:[#allocation2] sm:$0x3]
    %vm131 = vcmask 261120
    %v133 = vsel %vm131, 0.0, 0
    %135 = vmatpush.msra.mxu0 0.0
    %136 = vmatpush.msra.mxu0 0.0
    %137 = vmatpush.msra.mxu0 0.0
    %138 = vmatpush.msra.mxu0 0.0
    %139 = vmatpush.msra.mxu0 0.0
    %140 = vmatpush.msra.mxu0 0.0
    %141 = vmatpush.msra.mxu0 0.0
    %142 = vmatpush.msra.mxu0 0.0
    %143 = vmatpush.msra.mxu0 0.0
    %144 = vmatpush.msra.mxu0 0.0
    %145 = vmatpush.msra.mxu0 0.0
    %146 = vmatpush.msra.mxu0 0.0
    %147 = vmatpush.msra.mxu0 %v128
    %148 = vmatpush.msra.mxu0 %v127
    %149 = vmatpush.msra.mxu0 %v126
    %150 = vmatpush.msra.mxu0 %v125
    %151 = vmatmul.f32.gmra.mxu0 %v133
    %v152 = vpop.f32.mrf.mxu0
    %v153 = vadd.f32 0.0, %v152
    %154 = vdwg.mxu0
    %v155 = vadd.f32 %v130, %v153
    %v156 = vxor.u32 %v155, 2147483648
    %v157 = vmul.f32 %v156, 1.442695
    %v158 = vpow.pop %v157
    %v159 = vadd.f32 %v158, 1.0
    %v160 = vrcp.pop %v159
    %v161 = vmul.f32 %v159, %v160
    %v162 = vsub.f32 1.0, %v161
    %v163 = vmul.f32 %v160, %v162
    %v164 = vadd.f32 %v160, %v163
    %vm165 = vweird.f32 %v159
    %vm166 = vweird.f32 %v160
    %vm167 = vmor %vm165, %vm166
    %v168 = vsel %vm167, %v160, %v164
    %v169 = vand.u32 2147483647, %v159
    %vm170 = vcmp.eq.f32.partialorder %v169, 8.507059e+37
    %v171 = vand.u32 %v159, 2147483648
    %v172 = vor.u32 1.1754944e-38, %v171
    %v173 = vsel %vm170, %v172, %v168
    %v174 = vmul.f32 1.0, %v173
    %v176 = vperm.slane %v129, 0
    %177 = vrot.lane.b32.xlu0 %v176, 64
    %v178 = vpop.permute.xlu0 %177
    %v180 = vadd.f32 %v153, %v178
    %182 = vrot.lane.b32.xlu0 %v180, 64
    %v183 = vpop.permute.xlu0 %182
    %v185 = vmul.f32 %v174, %v183
    %187 = vrot.lane.b32.xlu0 %v185, 64
    %v188 = vpop.permute.xlu0 %187
    %v190 = vadd.f32 %v130, %v188
    %v191 = vtanh.pop %v190
    %v192 = vsub.f32 1.0, %v174
    %194 = vrot.lane.b32.xlu0 %v191, 96
    %v195 = vpop.permute.xlu0 %194
    %v197 = vmul.f32 %v192, %v195
    %v198 = vmul.f32 %v174, 0.0
    %v199 = vadd.f32 %v197, %v198
    %v200 = vld [vmem:[%s65] sm:$0x3]
    %202 = vrot.lane.b32.xlu0 %v199, 96
    %v203 = vpop.permute.xlu0 %202
    %v204 = vsel %vm131, %v203, 0
    %206 = vmatpush.msra.mxu0 0.0
    %207 = vmatpush.msra.mxu0 0.0
    %208 = vmatpush.msra.mxu0 0.0
    %209 = vmatpush.msra.mxu0 0.0
    %210 = vmatpush.msra.mxu0 0.0
    %211 = vmatpush.msra.mxu0 0.0
    %212 = vmatpush.msra.mxu0 0.0
    %213 = vmatpush.msra.mxu0 0.0
    %214 = vmatpush.msra.mxu0 0.0
    %215 = vmatpush.msra.mxu0 0.0
    %216 = vmatpush.msra.mxu0 0.0
    %217 = vmatpush.msra.mxu0 0.0
    %218 = vmatpush.msra.mxu0 %v128
    %219 = vmatpush.msra.mxu0 %v127
    %220 = vmatpush.msra.mxu0 %v126
    %221 = vmatpush.msra.mxu0 %v125
    %222 = vmatmul.f32.gmra.mxu0 %v204
    %v223 = vpop.f32.mrf.mxu0
    %v224 = vadd.f32 0.0, %v223
    %225 = vdwg.mxu0
    %v226 = vadd.f32 %v200, %v224
    %v227 = vxor.u32 %v226, 2147483648
    %v228 = vmul.f32 %v227, 1.442695
    %v229 = vpow.pop %v228
    %v230 = vadd.f32 %v229, 1.0
    %v231 = vrcp.pop %v230
    %v232 = vmul.f32 %v230, %v231
    %v233 = vsub.f32 1.0, %v232
    %v234 = vmul.f32 %v231, %v233
    %v235 = vadd.f32 %v231, %v234
    %vm236 = vweird.f32 %v230
    %vm237 = vweird.f32 %v231
    %vm238 = vmor %vm236, %vm237
    %v239 = vsel %vm238, %v231, %v235
    %v240 = vand.u32 2147483647, %v230
    %vm241 = vcmp.eq.f32.partialorder %v240, 8.507059e+37
    %v242 = vand.u32 %v230, 2147483648
    %v243 = vor.u32 1.1754944e-38, %v242
    %v244 = vsel %vm241, %v243, %v239
    %v245 = vmul.f32 1.0, %v244
    %v246 = vadd.f32 %v224, %v178
    %248 = vrot.lane.b32.xlu0 %v246, 64
    %v249 = vpop.permute.xlu0 %248
    %v251 = vmul.f32 %v245, %v249
    %253 = vrot.lane.b32.xlu0 %v251, 64
    %v254 = vpop.permute.xlu0 %253
    %v256 = vadd.f32 %v200, %v254
    %v257 = vtanh.pop %v256
    %v258 = vsub.f32 1.0, %v245
    %260 = vrot.lane.b32.xlu0 %v257, 96
    %v261 = vpop.permute.xlu0 %260
    %v263 = vmul.f32 %v258, %v261
    %v264 = vmul.f32 %v245, %v199
    %v265 = vadd.f32 %v263, %v264
    %v266 = vld [vmem:[%s74] sm:$0x3]
    %268 = vrot.lane.b32.xlu0 %v265, 96
    %v269 = vpop.permute.xlu0 %268
    %v270 = vsel %vm131, %v269, 0
    %272 = vmatpush.msra.mxu0 0.0
    %273 = vmatpush.msra.mxu0 0.0
    %274 = vmatpush.msra.mxu0 0.0
    %275 = vmatpush.msra.mxu0 0.0
    %276 = vmatpush.msra.mxu0 0.0
    %277 = vmatpush.msra.mxu0 0.0
    %278 = vmatpush.msra.mxu0 0.0
    %279 = vmatpush.msra.mxu0 0.0
    %280 = vmatpush.msra.mxu0 0.0
    %281 = vmatpush.msra.mxu0 0.0
    %282 = vmatpush.msra.mxu0 0.0
    %283 = vmatpush.msra.mxu0 0.0
    %284 = vmatpush.msra.mxu0 %v128
    %285 = vmatpush.msra.mxu0 %v127
    %286 = vmatpush.msra.mxu0 %v126
    %287 = vmatpush.msra.mxu0 %v125
    %288 = vmatmul.f32.gmra.mxu0 %v270
    %v289 = vpop.f32.mrf.mxu0
    %v290 = vadd.f32 0.0, %v289
    %291 = vdwg.mxu0
    %v292 = vadd.f32 %v266, %v290
    %v293 = vxor.u32 %v292, 2147483648
    %v294 = vmul.f32 %v293, 1.442695
    %v295 = vpow.pop %v294
    %v296 = vadd.f32 %v295, 1.0
    %v297 = vrcp.pop %v296
    %v298 = vmul.f32 %v296, %v297
    %v299 = vsub.f32 1.0, %v298
    %v300 = vmul.f32 %v297, %v299
    %v301 = vadd.f32 %v297, %v300
    %vm302 = vweird.f32 %v296
    %vm303 = vweird.f32 %v297
    %vm304 = vmor %vm302, %vm303
    %v305 = vsel %vm304, %v297, %v301
    %v306 = vand.u32 2147483647, %v296
    %vm307 = vcmp.eq.f32.partialorder %v306, 8.507059e+37
    %v308 = vand.u32 %v296, 2147483648
    %v309 = vor.u32 1.1754944e-38, %v308
    %v310 = vsel %vm307, %v309, %v305
    %v311 = vmul.f32 1.0, %v310
    %v312 = vadd.f32 %v290, %v178
    %314 = vrot.lane.b32.xlu0 %v312, 64
    %v315 = vpop.permute.xlu0 %314
    %v317 = vmul.f32 %v311, %v315
    %319 = vrot.lane.b32.xlu0 %v317, 64
    %v320 = vpop.permute.xlu0 %319
    %v322 = vadd.f32 %v266, %v320
    %v323 = vtanh.pop %v322
    %v324 = vsub.f32 1.0, %v311
    %326 = vrot.lane.b32.xlu0 %v323, 96
    %v327 = vpop.permute.xlu0 %326
    %v329 = vmul.f32 %v324, %v327
    %v330 = vmul.f32 %v311, %v265
    %v331 = vadd.f32 %v329, %v330
    %v332 = vld [vmem:[%s83] sm:$0x3]
    %334 = vrot.lane.b32.xlu0 %v331, 96
    %v335 = vpop.permute.xlu0 %334
    %v336 = vsel %vm131, %v335, 0
    %338 = vmatpush.msra.mxu0 0.0
    %339 = vmatpush.msra.mxu0 0.0
    %340 = vmatpush.msra.mxu0 0.0
    %341 = vmatpush.msra.mxu0 0.0
    %342 = vmatpush.msra.mxu0 0.0
    %343 = vmatpush.msra.mxu0 0.0
    %344 = vmatpush.msra.mxu0 0.0
    %345 = vmatpush.msra.mxu0 0.0
    %346 = vmatpush.msra.mxu0 0.0
    %347 = vmatpush.msra.mxu0 0.0
    %348 = vmatpush.msra.mxu0 0.0
    %349 = vmatpush.msra.mxu0 0.0
    %350 = vmatpush.msra.mxu0 %v128
    %351 = vmatpush.msra.mxu0 %v127
    %352 = vmatpush.msra.mxu0 %v126
    %353 = vmatpush.msra.mxu0 %v125
    %354 = vmatmul.f32.gmra.mxu0 %v336
    %v355 = vpop.f32.mrf.mxu0
    %v356 = vadd.f32 0.0, %v355
    %357 = vdwg.mxu0
    %v358 = vadd.f32 %v332, %v356
    %v359 = vxor.u32 %v358, 2147483648
    %v360 = vmul.f32 %v359, 1.442695
    %v361 = vpow.pop %v360
    %v362 = vadd.f32 %v361, 1.0
    %v363 = vrcp.pop %v362
    %v364 = vmul.f32 %v362, %v363
    %v365 = vsub.f32 1.0, %v364
    %v366 = vmul.f32 %v363, %v365
    %v367 = vadd.f32 %v363, %v366
    %vm368 = vweird.f32 %v362
    %vm369 = vweird.f32 %v363
    %vm370 = vmor %vm368, %vm369
    %v371 = vsel %vm370, %v363, %v367
    %v372 = vand.u32 2147483647, %v362
    %vm373 = vcmp.eq.f32.partialorder %v372, 8.507059e+37
    %v374 = vand.u32 %v362, 2147483648
    %v375 = vor.u32 1.1754944e-38, %v374
    %v376 = vsel %vm373, %v375, %v371
    %v377 = vmul.f32 1.0, %v376
    %v378 = vadd.f32 %v356, %v178
    %380 = vrot.lane.b32.xlu0 %v378, 64
    %v381 = vpop.permute.xlu0 %380
    %v383 = vmul.f32 %v377, %v381
    %385 = vrot.lane.b32.xlu0 %v383, 64
    %v386 = vpop.permute.xlu0 %385
    %v388 = vadd.f32 %v332, %v386
    %v389 = vtanh.pop %v388
    %v390 = vsub.f32 1.0, %v377
    %392 = vrot.lane.b32.xlu0 %v389, 96
    %v393 = vpop.permute.xlu0 %392
    %v395 = vmul.f32 %v390, %v393
    %v396 = vmul.f32 %v377, %v331
    %v397 = vadd.f32 %v395, %v396
    %v398 = vld [vmem:[%s92] sm:$0x3]
    %400 = vrot.lane.b32.xlu0 %v397, 96
    %v401 = vpop.permute.xlu0 %400
    %v402 = vsel %vm131, %v401, 0
    %404 = vmatpush.msra.mxu0 0.0
    %405 = vmatpush.msra.mxu0 0.0
    %406 = vmatpush.msra.mxu0 0.0
    %407 = vmatpush.msra.mxu0 0.0
    %408 = vmatpush.msra.mxu0 0.0
    %409 = vmatpush.msra.mxu0 0.0
    %410 = vmatpush.msra.mxu0 0.0
    %411 = vmatpush.msra.mxu0 0.0
    %412 = vmatpush.msra.mxu0 0.0
    %413 = vmatpush.msra.mxu0 0.0
    %414 = vmatpush.msra.mxu0 0.0
    %415 = vmatpush.msra.mxu0 0.0
    %416 = vmatpush.msra.mxu0 %v128
    %417 = vmatpush.msra.mxu0 %v127
    %418 = vmatpush.msra.mxu0 %v126
    %419 = vmatpush.msra.mxu0 %v125
    %420 = vmatmul.f32.gmra.mxu0 %v402
    %v421 = vpop.f32.mrf.mxu0
    %v422 = vadd.f32 0.0, %v421
    %423 = vdwg.mxu0
    %v424 = vadd.f32 %v398, %v422
    %v425 = vxor.u32 %v424, 2147483648
    %v426 = vmul.f32 %v425, 1.442695
    %v427 = vpow.pop %v426
    %v428 = vadd.f32 %v427, 1.0
    %v429 = vrcp.pop %v428
    %v430 = vmul.f32 %v428, %v429
    %v431 = vsub.f32 1.0, %v430
    %v432 = vmul.f32 %v429, %v431
    %v433 = vadd.f32 %v429, %v432
    %vm434 = vweird.f32 %v428
    %vm435 = vweird.f32 %v429
    %vm436 = vmor %vm434, %vm435
    %v437 = vsel %vm436, %v429, %v433
    %v438 = vand.u32 2147483647, %v428
    %vm439 = vcmp.eq.f32.partialorder %v438, 8.507059e+37
    %v440 = vand.u32 %v428, 2147483648
    %v441 = vor.u32 1.1754944e-38, %v440
    %v442 = vsel %vm439, %v441, %v437
    %v443 = vmul.f32 1.0, %v442
    %v444 = vadd.f32 %v422, %v178
    %446 = vrot.lane.b32.xlu0 %v444, 64
    %v447 = vpop.permute.xlu0 %446
    %v449 = vmul.f32 %v443, %v447
    %451 = vrot.lane.b32.xlu0 %v449, 64
    %v452 = vpop.permute.xlu0 %451
    %v454 = vadd.f32 %v398, %v452
    %v455 = vtanh.pop %v454
    %v456 = vsub.f32 1.0, %v443
    %458 = vrot.lane.b32.xlu0 %v455, 96
    %v459 = vpop.permute.xlu0 %458
    %v461 = vmul.f32 %v456, %v459
    %v462 = vmul.f32 %v443, %v397
    %v463 = vadd.f32 %v461, %v462
    %v464 = vld [vmem:[%s101] sm:$0x3]
    %466 = vrot.lane.b32.xlu0 %v463, 96
    %v467 = vpop.permute.xlu0 %466
    %v468 = vsel %vm131, %v467, 0
    %470 = vmatpush.msra.mxu0 0.0
    %471 = vmatpush.msra.mxu0 0.0
    %472 = vmatpush.msra.mxu0 0.0
    %473 = vmatpush.msra.mxu0 0.0
    %474 = vmatpush.msra.mxu0 0.0
    %475 = vmatpush.msra.mxu0 0.0
    %476 = vmatpush.msra.mxu0 0.0
    %477 = vmatpush.msra.mxu0 0.0
    %478 = vmatpush.msra.mxu0 0.0
    %479 = vmatpush.msra.mxu0 0.0
    %480 = vmatpush.msra.mxu0 0.0
    %481 = vmatpush.msra.mxu0 0.0
    %482 = vmatpush.msra.mxu0 %v128
    %483 = vmatpush.msra.mxu0 %v127
    %484 = vmatpush.msra.mxu0 %v126
    %485 = vmatpush.msra.mxu0 %v125
    %486 = vmatmul.f32.gmra.mxu0 %v468
    %v487 = vpop.f32.mrf.mxu0
    %v488 = vadd.f32 0.0, %v487
    %489 = vdwg.mxu0
    %v490 = vadd.f32 %v464, %v488
    %v491 = vxor.u32 %v490, 2147483648
    %v492 = vmul.f32 %v491, 1.442695
    %v493 = vpow.pop %v492
    %v494 = vadd.f32 %v493, 1.0
    %v495 = vrcp.pop %v494
    %v496 = vmul.f32 %v494, %v495
    %v497 = vsub.f32 1.0, %v496
    %v498 = vmul.f32 %v495, %v497
    %v499 = vadd.f32 %v495, %v498
    %vm500 = vweird.f32 %v494
    %vm501 = vweird.f32 %v495
    %vm502 = vmor %vm500, %vm501
    %v503 = vsel %vm502, %v495, %v499
    %v504 = vand.u32 2147483647, %v494
    %vm505 = vcmp.eq.f32.partialorder %v504, 8.507059e+37
    %v506 = vand.u32 %v494, 2147483648
    %v507 = vor.u32 1.1754944e-38, %v506
    %v508 = vsel %vm505, %v507, %v503
    %v509 = vmul.f32 1.0, %v508
    %v510 = vadd.f32 %v488, %v178
    %512 = vrot.lane.b32.xlu0 %v510, 64
    %v513 = vpop.permute.xlu0 %512
    %v515 = vmul.f32 %v509, %v513
    %517 = vrot.lane.b32.xlu0 %v515, 64
    %v518 = vpop.permute.xlu0 %517
    %v520 = vadd.f32 %v464, %v518
    %v521 = vtanh.pop %v520
    %v522 = vsub.f32 1.0, %v509
    %524 = vrot.lane.b32.xlu0 %v521, 96
    %v525 = vpop.permute.xlu0 %524
    %v527 = vmul.f32 %v522, %v525
    %v528 = vmul.f32 %v509, %v463
    %v529 = vadd.f32 %v527, %v528
    %v530 = vld [vmem:[%s110] sm:$0x3]
    %532 = vrot.lane.b32.xlu0 %v529, 96
    %v533 = vpop.permute.xlu0 %532
    %v534 = vsel %vm131, %v533, 0
    %536 = vmatpush.msra.mxu0 0.0
    %537 = vmatpush.msra.mxu0 0.0
    %538 = vmatpush.msra.mxu0 0.0
    %539 = vmatpush.msra.mxu0 0.0
    %540 = vmatpush.msra.mxu0 0.0
    %541 = vmatpush.msra.mxu0 0.0
    %542 = vmatpush.msra.mxu0 0.0
    %543 = vmatpush.msra.mxu0 0.0
    %544 = vmatpush.msra.mxu0 0.0
    %545 = vmatpush.msra.mxu0 0.0
    %546 = vmatpush.msra.mxu0 0.0
    %547 = vmatpush.msra.mxu0 0.0
    %548 = vmatpush.msra.mxu0 %v128
    %549 = vmatpush.msra.mxu0 %v127
    %550 = vmatpush.msra.mxu0 %v126
    %551 = vmatpush.msra.mxu0 %v125
    %552 = vmatmul.f32.gmra.mxu0 %v534
    %v553 = vpop.f32.mrf.mxu0
    %v554 = vadd.f32 0.0, %v553
    %555 = vdwg.mxu0
    %v556 = vadd.f32 %v530, %v554
    %v557 = vxor.u32 %v556, 2147483648
    %v558 = vmul.f32 %v557, 1.442695
    %v559 = vpow.pop %v558
    %v560 = vadd.f32 %v559, 1.0
    %v561 = vrcp.pop %v560
    %v562 = vmul.f32 %v560, %v561
    %v563 = vsub.f32 1.0, %v562
    %v564 = vmul.f32 %v561, %v563
    %v565 = vadd.f32 %v561, %v564
    %vm566 = vweird.f32 %v560
    %vm567 = vweird.f32 %v561
    %vm568 = vmor %vm566, %vm567
    %v569 = vsel %vm568, %v561, %v565
    %v570 = vand.u32 2147483647, %v560
    %vm571 = vcmp.eq.f32.partialorder %v570, 8.507059e+37
    %v572 = vand.u32 %v560, 2147483648
    %v573 = vor.u32 1.1754944e-38, %v572
    %v574 = vsel %vm571, %v573, %v569
    %v575 = vmul.f32 1.0, %v574
    %v576 = vadd.f32 %v554, %v178
    %578 = vrot.lane.b32.xlu0 %v576, 64
    %v579 = vpop.permute.xlu0 %578
    %v581 = vmul.f32 %v575, %v579
    %583 = vrot.lane.b32.xlu0 %v581, 64
    %v584 = vpop.permute.xlu0 %583
    %v586 = vadd.f32 %v530, %v584
    %v587 = vtanh.pop %v586
    %v588 = vsub.f32 1.0, %v575
    %590 = vrot.lane.b32.xlu0 %v587, 96
    %v591 = vpop.permute.xlu0 %590
    %v593 = vmul.f32 %v588, %v591
    %v594 = vmul.f32 %v575, %v529
    %v595 = vadd.f32 %v593, %v594
    %v596 = vld [vmem:[%s119] sm:$0x3]
    %598 = vrot.lane.b32.xlu0 %v595, 96
    %v599 = vpop.permute.xlu0 %598
    %v600 = vsel %vm131, %v599, 0
    %602 = vmatpush.msra.mxu0 0.0
    %603 = vmatpush.msra.mxu0 0.0
    %604 = vmatpush.msra.mxu0 0.0
    %605 = vmatpush.msra.mxu0 0.0
    %606 = vmatpush.msra.mxu0 0.0
    %607 = vmatpush.msra.mxu0 0.0
    %608 = vmatpush.msra.mxu0 0.0
    %609 = vmatpush.msra.mxu0 0.0
    %610 = vmatpush.msra.mxu0 0.0
    %611 = vmatpush.msra.mxu0 0.0
    %612 = vmatpush.msra.mxu0 0.0
    %613 = vmatpush.msra.mxu0 0.0
    %614 = vmatpush.msra.mxu0 %v128
    %615 = vmatpush.msra.mxu0 %v127
    %616 = vmatpush.msra.mxu0 %v126
    %617 = vmatpush.msra.mxu0 %v125
    %618 = vmatmul.f32.gmra.mxu0 %v600
    %v619 = vpop.f32.mrf.mxu0
    %v620 = vadd.f32 0.0, %v619
    %621 = vdwg.mxu0
    %v622 = vadd.f32 %v596, %v620
    %v623 = vxor.u32 %v622, 2147483648
    %v624 = vmul.f32 %v623, 1.442695
    %v625 = vpow.pop %v624
    %v626 = vadd.f32 %v625, 1.0
    %v627 = vrcp.pop %v626
    %v628 = vmul.f32 %v626, %v627
    %v629 = vsub.f32 1.0, %v628
    %v630 = vmul.f32 %v627, %v629
    %v631 = vadd.f32 %v627, %v630
    %vm632 = vweird.f32 %v626
    %vm633 = vweird.f32 %v627
    %vm634 = vmor %vm632, %vm633
    %v635 = vsel %vm634, %v627, %v631
    %v636 = vand.u32 2147483647, %v626
    %vm637 = vcmp.eq.f32.partialorder %v636, 8.507059e+37
    %v638 = vand.u32 %v626, 2147483648
    %v639 = vor.u32 1.1754944e-38, %v638
    %v640 = vsel %vm637, %v639, %v635
    %v641 = vmul.f32 1.0, %v640
    %v642 = vadd.f32 %v620, %v178
    %644 = vrot.lane.b32.xlu0 %v642, 64
    %v645 = vpop.permute.xlu0 %644
    %v647 = vmul.f32 %v641, %v645
    %649 = vrot.lane.b32.xlu0 %v647, 64
    %v650 = vpop.permute.xlu0 %649
    %v652 = vadd.f32 %v596, %v650
    %v653 = vtanh.pop %v652
    %v654 = vsub.f32 1.0, %v641
    %656 = vrot.lane.b32.xlu0 %v653, 96
    %v657 = vpop.permute.xlu0 %656
    %v659 = vmul.f32 %v654, %v657
    %v660 = vmul.f32 %v641, %v595
    %v661 = vadd.f32 %v659, %v660
    %v662 = vld [vmem:[%s4] sm:$0xff]
    %v663 = vld [vmem:[%s4 + $0x8] sm:$0xff]
    %v664 = vld [vmem:[%s4 + $0x10] sm:$0xff]
    %v665 = vld [vmem:[%s4 + $0x18] sm:$0xff]
    %v666 = vld [vmem:[%s5] sm:$0x1]
    %v668 = vperm.slane %v666, 0
    %671 = vrot.lane.b32.xlu0 %v661, 96
    %v672 = vpop.permute.xlu0 %671
    %v673 = vsel %vm131, %v672, 0
    %675 = vmatpush.msra.mxu0 0.0
    %676 = vmatpush.msra.mxu0 0.0
    %677 = vmatpush.msra.mxu0 0.0
    %678 = vmatpush.msra.mxu0 0.0
    %679 = vmatpush.msra.mxu0 0.0
    %680 = vmatpush.msra.mxu0 0.0
    %681 = vmatpush.msra.mxu0 0.0
    %682 = vmatpush.msra.mxu0 0.0
    %683 = vmatpush.msra.mxu0 0.0
    %684 = vmatpush.msra.mxu0 0.0
    %685 = vmatpush.msra.mxu0 0.0
    %686 = vmatpush.msra.mxu0 0.0
    %687 = vmatpush.msra.mxu0 %v665
    %688 = vmatpush.msra.mxu0 %v664
    %689 = vmatpush.msra.mxu0 %v663
    %690 = vmatpush.msra.mxu0 %v662
    %691 = vmatmul.f32.gmra.mxu0 %v673
    %v692 = vpop.f32.mrf.mxu0
    %v693 = vadd.f32 %v668, %v692
    %694 = vdwg.mxu0
    %v695 = vxor.u32 %v693, 2147483648
    %v696 = vmul.f32 %v695, 1.442695
    %v697 = vpow.pop %v696
    %v698 = vadd.f32 %v697, 1.0
    %v699 = vrcp.pop %v698
    %v700 = vmul.f32 %v698, %v699
    %v701 = vsub.f32 1.0, %v700
    %v702 = vmul.f32 %v699, %v701
    %v703 = vadd.f32 %v699, %v702
    %vm704 = vweird.f32 %v698
    %vm705 = vweird.f32 %v699
    %vm706 = vmor %vm704, %vm705
    %v707 = vsel %vm706, %v699, %v703
    %v708 = vand.u32 2147483647, %v698
    %vm709 = vcmp.eq.f32.partialorder %v708, 8.507059e+37
    %v710 = vand.u32 %v698, 2147483648
    %v711 = vor.u32 1.1754944e-38, %v710
    %v712 = vsel %vm709, %v711, %v707
    %v713 = vmul.f32 1.0, %v712
    %vm714 = vcmask 9216
    %715 = vst.msk [vmem:[#allocation8] sm:$0x3] %vm714, %v713
    // Predicated region
    $region34: #{quantum_nlp_forward.1} parent=1 // pred_check
      _
    $region35: #{quantum_nlp_forward.1} parent=1 // pred_check_branch
      %717 = sbr.rel (0) target = $region37
    $region36: #{quantum_nlp_forward.1} parent=1 // pred_region
      %719 = vsyncadd [#allocation5], 0
      %s721 = sshll.u32 [#allocation8], 4
      %s722 = int_to_ptr.vmem [resolvable:$true] %s721
      %s723 = sshll.u32 %s6, 4
      %s724 = int_to_ptr.hbm [resolvable:$true] %s723
      %726 = dma.vmem_to_hbm [thread:$0]  %s722, 32, %s724, [#allocation5]
    $region37: #{quantum_nlp_forward.1} parent=1 // pred_fallthru
      _
    // Predicated region
    $region38: #{quantum_nlp_forward.1} parent=1 // pred_check
      _
    $region39: #{quantum_nlp_forward.1} parent=1 // pred_check_branch
      %728 = sbr.rel (0) target = $region41
    $region40: #{quantum_nlp_forward.1} parent=1 // pred_region
      %730 = dma.done [#allocation5], 32
    $region41: #{quantum_nlp_forward.1} parent=1 // pred_fallthru
      _
    %731 = vsyncpa [#allocation4], 1
    %732 = vsyncpa [#allocation5], 1
    %733 = vsyncpa [#allocation6], 1

</llo_original>
